<compile_context>
chip_gen: v7x
topology: tpu7x:2x2x1
jax: 0.10.0
libtpu: 0.0.40
codegen_flags: <defaults>
</compile_context>

<pallas_src>
import jax
import jax.numpy as jnp
import numpy as np
from jax.experimental import pallas as pl
from jax.experimental.pallas import tpu as pltpu

# ----------------------------- problem sizes ------------------------------
T = 8          # sequence length
D = 16         # input_size
H = 32         # hidden_size
O = 4          # output_size
G = 4 * H      # 128 = one full lane row; the cell lane-math relies on this
assert G == 128 and D % 8 == 0

# Packed-parameter slab row offsets (all multiples of 8 -> tile-aligned views)
R_WIH1 = 0                 # (D, 4H)   layer-1 input weights
R_B1   = R_WIH1 + D        # (1, 4H)   layer-1 combined bias
R_WHH1 = R_B1 + 8          # (H, 4H)   layer-1 recurrent weights
R_W2   = R_WHH1 + H        # (2H, 4H)  fused [Wih2; Whh2]
R_B2   = R_W2 + 2 * H      # (1, 4H)   layer-2 combined bias
R_WFC  = R_B2 + 8          # (H, 4H)   FC weights (cols O: zero)
R_BFC  = R_WFC + H         # (1, 4H)   FC bias   (cols O: zero)
R_TOT  = R_BFC + 8         # 168 rows total


# ------------------------------- kernel -----------------------------------
def siamese_lstm_kernel(x_ref, p_ref, out_ref):
    # ---- static, tile-aligned views into the packed parameter slab ----
    wih1 = p_ref[R_WIH1:R_WIH1 + D, :]        # (D, 4H)
    b1   = p_ref[R_B1:R_B1 + 1, :]            # (1, 4H)
    whh1 = p_ref[R_WHH1:R_WHH1 + H, :]        # (H, 4H)
    w2   = p_ref[R_W2:R_W2 + 2 * H, :]        # (2H, 4H)
    b2   = p_ref[R_B2:R_B2 + 1, :]            # (1, 4H)
    wfc  = p_ref[R_WFC:R_WFC + H, :]          # (H, 4H)
    bfc  = p_ref[R_BFC:R_BFC + 1, :]          # (1, 4H)

    # Hoisted layer-1 input projection + bias: one (2T, D) @ (D, 4H) matmul
    # for all timesteps of both branches (no recurrent dependency).
    pre1 = jnp.dot(x_ref[...], wih1,
                   preferred_element_type=jnp.float32) + b1        # (2T, 4H)

    # Gate blocks of 32 lanes (columns permuted at pack time): 0:o 1:i 2:f 3:g.
    # State homes: h -> lanes [0, H)   (block 0: h[:, :H] slice is lane-0
    #                                   aligned, no cross-lane move),
    #              c -> lanes [2H, 3H) (block 2 = f's block: f*c needs no move).
    def cell(gates, c):
        sg = jax.nn.sigmoid(gates)                      # (2, 4H), EUP
        th = jnp.tanh(gates)                            # (2, 4H), EUP
        # tanh(g): block 3 -> block 1 (shift by half the row -> identical
        # result whichever rotation direction pltpu.roll uses).
        thr = pltpu.roll(th, 2 * H, 1)                  # XLU
        p_ig = sg * thr                                 # block 1: sig(i)*tanh(g)
        p_fc = sg * c                                   # block 2: sig(f)*c
        # block 1 -> block 2 (+H lanes): explicit concat == np.roll(x, H, 1).
        p_ig = jnp.concatenate([p_ig[:, 3 * H:], p_ig[:, :3 * H]], axis=1)
        c_new = p_fc + p_ig                             # live in block 2
        tc = jnp.tanh(c_new)                            # EUP
        tcr = pltpu.roll(tc, 2 * H, 1)                  # block 2 -> block 0
        h_new = sg * tcr                                # block 0: sig(o)*tanh(c)
        return h_new, c_new        # non-live lanes hold bounded garbage only

    zero = jnp.zeros((2, G), jnp.float32)
    h1, c1, h2, c2 = zero, zero, zero, zero

    # Statically unrolled time loop; only layer-1's recurrent matmul + cell
    # sit on the serial critical path (layer-2(t) overlaps layer-1(t+1)).
    # TODO(synk): weight-stationary MXU driving (matmul_push_rhs/acc_lhs/pop)
    # not used; RHS hoisting is left to Mosaic on the unrolled loop.
    for t in range(T):
        g1 = pre1[2 * t:2 * t + 2, :] + jnp.dot(
            h1[:, :H], whh1, preferred_element_type=jnp.float32)   # (2, 4H)
        h1, c1 = cell(g1, c1)

        lhs2 = jnp.concatenate([h1[:, :H], h2[:, :H]], axis=1)     # (2, 2H)
        g2 = jnp.dot(lhs2, w2, preferred_element_type=jnp.float32) + b2
        h2, c2 = cell(g2, c2)

    # Final Linear on lstm2's last hidden state; output is a full 128-lane
    # row (cols O: are zero) so the store is lane-dense / unmasked.
    out_ref[...] = jnp.dot(h2[:, :H], wfc,
                           preferred_element_type=jnp.float32) + bfc


# --------------------------- parameter packing ------------------------------
def pack_params(params):
    """Pack (wih1, whh1, b1, wih2, whh2, b2, wfc, bfc) into one (168, 128) f32
    slab, with gate columns permuted (i,f,g,o) -> (o,i,f,g).  Built ONCE at
    parameter-setup time so the per-call kernel sees exactly 2 input DMAs."""
    wih1, whh1, b1, wih2, whh2, b2, wfc, bfc = params

    def perm(w):  # reorder gate columns: torch (i,f,g,o) -> kernel (o,i,f,g)
        i, f, g, o = (w[..., 0 * H:1 * H], w[..., 1 * H:2 * H],
                      w[..., 2 * H:3 * H], w[..., 3 * H:4 * H])
        return jnp.concatenate([o, i, f, g], axis=-1)

    def rows8(a):  # pad row count up to a multiple of 8 (sublane tile)
        r = ((a.shape[0] + 7) // 8) * 8
        return jnp.zeros((r, G), jnp.float32).at[:a.shape[0], :].set(a)

    wfc_pad = jnp.zeros((H, G), jnp.float32).at[:, :O].set(wfc)
    bfc_pad = jnp.zeros((1, G), jnp.float32).at[:, :O].set(bfc)

    slab = jnp.concatenate([
        rows8(perm(wih1)),            # rows   0: 16
        rows8(perm(b1)),              # rows  16: 24
        perm(whh1),                   # rows  24: 56
        perm(wih2), perm(whh2),       # rows  56:120  (fused K for layer 2)
        rows8(perm(b2)),              # rows 120:128
        wfc_pad,                      # rows 128:160
        rows8(bfc_pad),               # rows 160:168
    ], axis=0)
    assert slab.shape == (R_TOT, G)
    return slab


# ------------------------------- wrapper -----------------------------------
@jax.jit
def siamese_lstm_forward(x1, x2, slab):
    # Interleave the two branches: row 2t = branch0[t], row 2t+1 = branch1[t],
    # so every recurrence matmul runs both branches in one M=2 pass.
    x = jnp.stack([x1, x2], axis=1).reshape(2 * T, D)               # (2T, D)

    vmem = pl.BlockSpec(memory_space=pltpu.MemorySpace.VMEM)
    out = pl.pallas_call(
        siamese_lstm_kernel,
        out_shape=jax.ShapeDtypeStruct((2, G), jnp.float32),
        in_specs=[vmem, vmem],
        out_specs=vmem,
    )(x, slab)

    return out[0, :O], out[1, :O]                                   # each (O,)


# ------------------------- pure-JAX reference ------------------------------
def _lstm_layer_ref(x, w_ih, w_hh, b):
    def step(carry, x_t):
        h, c = carry
        gt = x_t @ w_ih + h @ w_hh + b[0]
        i = jax.nn.sigmoid(gt[0 * H:1 * H])
        f = jax.nn.sigmoid(gt[1 * H:2 * H])
        g = jnp.tanh(gt[2 * H:3 * H])
        o = jax.nn.sigmoid(gt[3 * H:4 * H])
        c = f * c + i * g
        h = o * jnp.tanh(c)
        return (h, c), h
    (h, _), hs = jax.lax.scan(step, (jnp.zeros(H), jnp.zeros(H)), x)
    return hs, h


def _forward_once_ref(x, params):
    (wih1, whh1, b1, wih2, whh2, b2, wfc, bfc) = params
    hs1, _ = _lstm_layer_ref(x, wih1, whh1, b1)
    _, h2 = _lstm_layer_ref(hs1, wih2, whh2, b2)
    return h2 @ wfc + bfc[0]


# --------------------------------- main ------------------------------------
if __name__ == "__main__":
    key = jax.random.PRNGKey(0)
    keys = jax.random.split(key, 12)
    s = 1.0 / np.sqrt(H)   # PyTorch default LSTM/Linear init scale
    u = lambda k, shape: jax.random.uniform(k, shape, jnp.float32, -s, s)

    # weights stored transposed (D_in, 4H) for x @ W; bias = b_ih + b_hh
    wih1 = u(keys[0], (D, 4 * H))
    whh1 = u(keys[1], (H, 4 * H))
    b1 = u(keys[2], (1, 4 * H)) + u(keys[3], (1, 4 * H))
    wih2 = u(keys[4], (H, 4 * H))
    whh2 = u(keys[5], (H, 4 * H))
    b2 = u(keys[6], (1, 4 * H)) + u(keys[7], (1, 4 * H))
    wfc = u(keys[8], (H, O))
    bfc = u(keys[9], (1, O))
    params = (wih1, whh1, b1, wih2, whh2, b2, wfc, bfc)

    # One-time parameter packing (outside the per-call jitted path).
    slab = jax.block_until_ready(pack_params(params))

    x1 = jax.random.normal(keys[10], (T, D), jnp.float32)
    x2 = jax.random.normal(keys[11], (T, D), jnp.float32)

    out1, out2 = siamese_lstm_forward(x1, x2, slab)
    jax.block_until_ready((out1, out2))

    ref1 = _forward_once_ref(x1, params)
    ref2 = _forward_once_ref(x2, params)
    np.testing.assert_allclose(np.asarray(out1), np.asarray(ref1),
                               rtol=1e-4, atol=1e-4)
    np.testing.assert_allclose(np.asarray(out2), np.asarray(ref2),
                               rtol=1e-4, atol=1e-4)
    print("KERNEL_OK")
</pallas_src>

<mosaic_0001>
module attributes {stable_mosaic.version = 11 : i64} {
  func.func @siamese_lstm_kernel(%arg0: memref<16x16xf32, #tpu.memory_space<vmem>>, %arg1: memref<168x128xf32, #tpu.memory_space<vmem>>, %arg2: memref<2x128xf32, #tpu.memory_space<vmem>>) attributes {dimension_semantics = [], scalar_prefetch = 0 : i64, scratch_operands = 0 : i64, tpu.core_type = #tpu.core_type<tc>} {
    %c0 = arith.constant 0 : index
    %c0_0 = arith.constant 0 : index
    %0 = vector.load %arg1[%c0, %c0_0] : memref<168x128xf32, #tpu.memory_space<vmem>>, vector<16x128xf32>
    %c16 = arith.constant 16 : index
    %c0_1 = arith.constant 0 : index
    %1 = vector.load %arg1[%c16, %c0_1] : memref<168x128xf32, #tpu.memory_space<vmem>>, vector<1x128xf32>
    %c24 = arith.constant 24 : index
    %c0_2 = arith.constant 0 : index
    %2 = vector.load %arg1[%c24, %c0_2] : memref<168x128xf32, #tpu.memory_space<vmem>>, vector<32x128xf32>
    %c56 = arith.constant 56 : index
    %c0_3 = arith.constant 0 : index
    %3 = vector.load %arg1[%c56, %c0_3] : memref<168x128xf32, #tpu.memory_space<vmem>>, vector<64x128xf32>
    %c120 = arith.constant 120 : index
    %c0_4 = arith.constant 0 : index
    %4 = vector.load %arg1[%c120, %c0_4] : memref<168x128xf32, #tpu.memory_space<vmem>>, vector<1x128xf32>
    %c128 = arith.constant 128 : index
    %c0_5 = arith.constant 0 : index
    %5 = vector.load %arg1[%c128, %c0_5] : memref<168x128xf32, #tpu.memory_space<vmem>>, vector<32x128xf32>
    %c160 = arith.constant 160 : index
    %c0_6 = arith.constant 0 : index
    %6 = vector.load %arg1[%c160, %c0_6] : memref<168x128xf32, #tpu.memory_space<vmem>>, vector<1x128xf32>
    %c0_7 = arith.constant 0 : index
    %c0_8 = arith.constant 0 : index
    %7 = vector.load %arg0[%c0_7, %c0_8] : memref<16x16xf32, #tpu.memory_space<vmem>>, vector<16x16xf32>
    %cst = arith.constant dense<0.000000e+00> : vector<16x128xf32>
    %8 = tpu.matmul %7, %0, %cst {dimension_numbers = #tpu.dot_dimension_numbers<[1], [0], [0], [1], [0, 0, 1, 1], [], []>} : vector<16x16xf32>, vector<16x128xf32>, vector<16x128xf32> -> vector<16x128xf32>
    %9 = vector.broadcast %1 : vector<1x128xf32> to vector<16x128xf32>
    %10 = arith.addf %8, %9 : vector<16x128xf32>
    %cst_9 = arith.constant 0.000000e+00 : f32
    %11 = vector.broadcast %cst_9 : f32 to vector<2x128xf32>
    %12 = vector.extract_strided_slice %10 {offsets = [0, 0], sizes = [2, 128], strides = [1, 1]} : vector<16x128xf32> to vector<2x128xf32>
    %13 = vector.extract_strided_slice %11 {offsets = [0, 0], sizes = [2, 32], strides = [1, 1]} : vector<2x128xf32> to vector<2x32xf32>
    %cst_10 = arith.constant dense<0.000000e+00> : vector<2x128xf32>
    %14 = tpu.matmul %13, %2, %cst_10 {dimension_numbers = #tpu.dot_dimension_numbers<[1], [0], [0], [1], [0, 0, 1, 1], [], []>} : vector<2x32xf32>, vector<32x128xf32>, vector<2x128xf32> -> vector<2x128xf32>
    %15 = arith.addf %12, %14 : vector<2x128xf32>
    %16 = arith.negf %15 : vector<2x128xf32>
    %17 = math.exp %16 : vector<2x128xf32>
    %cst_11 = arith.constant 1.000000e+00 : f32
    %18 = vector.broadcast %cst_11 : f32 to vector<2x128xf32>
    %19 = arith.addf %18, %17 : vector<2x128xf32>
    %20 = arith.divf %18, %19 : vector<2x128xf32>
    %21 = math.tanh %15 : vector<2x128xf32>
    %c64_i32 = arith.constant 64 : i32
    %22 = tpu.dynamic_rotate %21 by %c64_i32 dim 1 : vector<2x128xf32>, i32 -> vector<2x128xf32>
    %23 = arith.mulf %20, %22 : vector<2x128xf32>
    %24 = arith.mulf %20, %11 : vector<2x128xf32>
    %25 = vector.extract_strided_slice %23 {offsets = [0, 96], sizes = [2, 32], strides = [1, 1]} : vector<2x128xf32> to vector<2x32xf32>
    %26 = vector.extract_strided_slice %23 {offsets = [0, 0], sizes = [2, 96], strides = [1, 1]} : vector<2x128xf32> to vector<2x96xf32>
    %27 = tpu.concatenate %25, %26 in 1 : vector<2x32xf32>, vector<2x96xf32> -> vector<2x128xf32>
    %28 = arith.addf %24, %27 : vector<2x128xf32>
    %29 = math.tanh %28 : vector<2x128xf32>
    %c64_i32_12 = arith.constant 64 : i32
    %30 = tpu.dynamic_rotate %29 by %c64_i32_12 dim 1 : vector<2x128xf32>, i32 -> vector<2x128xf32>
    %31 = arith.mulf %20, %30 : vector<2x128xf32>
    %32 = vector.extract_strided_slice %31 {offsets = [0, 0], sizes = [2, 32], strides = [1, 1]} : vector<2x128xf32> to vector<2x32xf32>
    %33 = vector.extract_strided_slice %11 {offsets = [0, 0], sizes = [2, 32], strides = [1, 1]} : vector<2x128xf32> to vector<2x32xf32>
    %34 = tpu.concatenate %32, %33 in 1 : vector<2x32xf32>, vector<2x32xf32> -> vector<2x64xf32>
    %cst_13 = arith.constant dense<0.000000e+00> : vector<2x128xf32>
    %35 = tpu.matmul %34, %3, %cst_13 {dimension_numbers = #tpu.dot_dimension_numbers<[1], [0], [0], [1], [0, 0, 1, 1], [], []>} : vector<2x64xf32>, vector<64x128xf32>, vector<2x128xf32> -> vector<2x128xf32>
    %36 = vector.broadcast %4 : vector<1x128xf32> to vector<2x128xf32>
    %37 = arith.addf %35, %36 : vector<2x128xf32>
    %38 = arith.negf %37 : vector<2x128xf32>
    %39 = math.exp %38 : vector<2x128xf32>
    %cst_14 = arith.constant 1.000000e+00 : f32
    %40 = vector.broadcast %cst_14 : f32 to vector<2x128xf32>
    %41 = arith.addf %40, %39 : vector<2x128xf32>
    %42 = arith.divf %40, %41 : vector<2x128xf32>
    %43 = math.tanh %37 : vector<2x128xf32>
    %c64_i32_15 = arith.constant 64 : i32
    %44 = tpu.dynamic_rotate %43 by %c64_i32_15 dim 1 : vector<2x128xf32>, i32 -> vector<2x128xf32>
    %45 = arith.mulf %42, %44 : vector<2x128xf32>
    %46 = arith.mulf %42, %11 : vector<2x128xf32>
    %47 = vector.extract_strided_slice %45 {offsets = [0, 96], sizes = [2, 32], strides = [1, 1]} : vector<2x128xf32> to vector<2x32xf32>
    %48 = vector.extract_strided_slice %45 {offsets = [0, 0], sizes = [2, 96], strides = [1, 1]} : vector<2x128xf32> to vector<2x96xf32>
    %49 = tpu.concatenate %47, %48 in 1 : vector<2x32xf32>, vector<2x96xf32> -> vector<2x128xf32>
    %50 = arith.addf %46, %49 : vector<2x128xf32>
    %51 = math.tanh %50 : vector<2x128xf32>
    %c64_i32_16 = arith.constant 64 : i32
    %52 = tpu.dynamic_rotate %51 by %c64_i32_16 dim 1 : vector<2x128xf32>, i32 -> vector<2x128xf32>
    %53 = arith.mulf %42, %52 : vector<2x128xf32>
    %54 = vector.extract_strided_slice %10 {offsets = [2, 0], sizes = [2, 128], strides = [1, 1]} : vector<16x128xf32> to vector<2x128xf32>
    %55 = vector.extract_strided_slice %31 {offsets = [0, 0], sizes = [2, 32], strides = [1, 1]} : vector<2x128xf32> to vector<2x32xf32>
    %cst_17 = arith.constant dense<0.000000e+00> : vector<2x128xf32>
    %56 = tpu.matmul %55, %2, %cst_17 {dimension_numbers = #tpu.dot_dimension_numbers<[1], [0], [0], [1], [0, 0, 1, 1], [], []>} : vector<2x32xf32>, vector<32x128xf32>, vector<2x128xf32> -> vector<2x128xf32>
    %57 = arith.addf %54, %56 : vector<2x128xf32>
    %58 = arith.negf %57 : vector<2x128xf32>
    %59 = math.exp %58 : vector<2x128xf32>
    %cst_18 = arith.constant 1.000000e+00 : f32
    %60 = vector.broadcast %cst_18 : f32 to vector<2x128xf32>
    %61 = arith.addf %60, %59 : vector<2x128xf32>
    %62 = arith.divf %60, %61 : vector<2x128xf32>
    %63 = math.tanh %57 : vector<2x128xf32>
    %c64_i32_19 = arith.constant 64 : i32
    %64 = tpu.dynamic_rotate %63 by %c64_i32_19 dim 1 : vector<2x128xf32>, i32 -> vector<2x128xf32>
    %65 = arith.mulf %62, %64 : vector<2x128xf32>
    %66 = arith.mulf %62, %28 : vector<2x128xf32>
    %67 = vector.extract_strided_slice %65 {offsets = [0, 96], sizes = [2, 32], strides = [1, 1]} : vector<2x128xf32> to vector<2x32xf32>
    %68 = vector.extract_strided_slice %65 {offsets = [0, 0], sizes = [2, 96], strides = [1, 1]} : vector<2x128xf32> to vector<2x96xf32>
    %69 = tpu.concatenate %67, %68 in 1 : vector<2x32xf32>, vector<2x96xf32> -> vector<2x128xf32>
    %70 = arith.addf %66, %69 : vector<2x128xf32>
    %71 = math.tanh %70 : vector<2x128xf32>
    %c64_i32_20 = arith.constant 64 : i32
    %72 = tpu.dynamic_rotate %71 by %c64_i32_20 dim 1 : vector<2x128xf32>, i32 -> vector<2x128xf32>
    %73 = arith.mulf %62, %72 : vector<2x128xf32>
    %74 = vector.extract_strided_slice %73 {offsets = [0, 0], sizes = [2, 32], strides = [1, 1]} : vector<2x128xf32> to vector<2x32xf32>
    %75 = vector.extract_strided_slice %53 {offsets = [0, 0], sizes = [2, 32], strides = [1, 1]} : vector<2x128xf32> to vector<2x32xf32>
    %76 = tpu.concatenate %74, %75 in 1 : vector<2x32xf32>, vector<2x32xf32> -> vector<2x64xf32>
    %cst_21 = arith.constant dense<0.000000e+00> : vector<2x128xf32>
    %77 = tpu.matmul %76, %3, %cst_21 {dimension_numbers = #tpu.dot_dimension_numbers<[1], [0], [0], [1], [0, 0, 1, 1], [], []>} : vector<2x64xf32>, vector<64x128xf32>, vector<2x128xf32> -> vector<2x128xf32>
    %78 = vector.broadcast %4 : vector<1x128xf32> to vector<2x128xf32>
    %79 = arith.addf %77, %78 : vector<2x128xf32>
    %80 = arith.negf %79 : vector<2x128xf32>
    %81 = math.exp %80 : vector<2x128xf32>
    %cst_22 = arith.constant 1.000000e+00 : f32
    %82 = vector.broadcast %cst_22 : f32 to vector<2x128xf32>
    %83 = arith.addf %82, %81 : vector<2x128xf32>
    %84 = arith.divf %82, %83 : vector<2x128xf32>
    %85 = math.tanh %79 : vector<2x128xf32>
    %c64_i32_23 = arith.constant 64 : i32
    %86 = tpu.dynamic_rotate %85 by %c64_i32_23 dim 1 : vector<2x128xf32>, i32 -> vector<2x128xf32>
    %87 = arith.mulf %84, %86 : vector<2x128xf32>
    %88 = arith.mulf %84, %50 : vector<2x128xf32>
    %89 = vector.extract_strided_slice %87 {offsets = [0, 96], sizes = [2, 32], strides = [1, 1]} : vector<2x128xf32> to vector<2x32xf32>
    %90 = vector.extract_strided_slice %87 {offsets = [0, 0], sizes = [2, 96], strides = [1, 1]} : vector<2x128xf32> to vector<2x96xf32>
    %91 = tpu.concatenate %89, %90 in 1 : vector<2x32xf32>, vector<2x96xf32> -> vector<2x128xf32>
    %92 = arith.addf %88, %91 : vector<2x128xf32>
    %93 = math.tanh %92 : vector<2x128xf32>
    %c64_i32_24 = arith.constant 64 : i32
    %94 = tpu.dynamic_rotate %93 by %c64_i32_24 dim 1 : vector<2x128xf32>, i32 -> vector<2x128xf32>
    %95 = arith.mulf %84, %94 : vector<2x128xf32>
    %96 = vector.extract_strided_slice %10 {offsets = [4, 0], sizes = [2, 128], strides = [1, 1]} : vector<16x128xf32> to vector<2x128xf32>
    %97 = vector.extract_strided_slice %73 {offsets = [0, 0], sizes = [2, 32], strides = [1, 1]} : vector<2x128xf32> to vector<2x32xf32>
    %cst_25 = arith.constant dense<0.000000e+00> : vector<2x128xf32>
    %98 = tpu.matmul %97, %2, %cst_25 {dimension_numbers = #tpu.dot_dimension_numbers<[1], [0], [0], [1], [0, 0, 1, 1], [], []>} : vector<2x32xf32>, vector<32x128xf32>, vector<2x128xf32> -> vector<2x128xf32>
    %99 = arith.addf %96, %98 : vector<2x128xf32>
    %100 = arith.negf %99 : vector<2x128xf32>
    %101 = math.exp %100 : vector<2x128xf32>
    %cst_26 = arith.constant 1.000000e+00 : f32
    %102 = vector.broadcast %cst_26 : f32 to vector<2x128xf32>
    %103 = arith.addf %102, %101 : vector<2x128xf32>
    %104 = arith.divf %102, %103 : vector<2x128xf32>
    %105 = math.tanh %99 : vector<2x128xf32>
    %c64_i32_27 = arith.constant 64 : i32
    %106 = tpu.dynamic_rotate %105 by %c64_i32_27 dim 1 : vector<2x128xf32>, i32 -> vector<2x128xf32>
    %107 = arith.mulf %104, %106 : vector<2x128xf32>
    %108 = arith.mulf %104, %70 : vector<2x128xf32>
    %109 = vector.extract_strided_slice %107 {offsets = [0, 96], sizes = [2, 32], strides = [1, 1]} : vector<2x128xf32> to vector<2x32xf32>
    %110 = vector.extract_strided_slice %107 {offsets = [0, 0], sizes = [2, 96], strides = [1, 1]} : vector<2x128xf32> to vector<2x96xf32>
    %111 = tpu.concatenate %109, %110 in 1 : vector<2x32xf32>, vector<2x96xf32> -> vector<2x128xf32>
    %112 = arith.addf %108, %111 : vector<2x128xf32>
    %113 = math.tanh %112 : vector<2x128xf32>
    %c64_i32_28 = arith.constant 64 : i32
    %114 = tpu.dynamic_rotate %113 by %c64_i32_28 dim 1 : vector<2x128xf32>, i32 -> vector<2x128xf32>
    %115 = arith.mulf %104, %114 : vector<2x128xf32>
    %116 = vector.extract_strided_slice %115 {offsets = [0, 0], sizes = [2, 32], strides = [1, 1]} : vector<2x128xf32> to vector<2x32xf32>
    %117 = vector.extract_strided_slice %95 {offsets = [0, 0], sizes = [2, 32], strides = [1, 1]} : vector<2x128xf32> to vector<2x32xf32>
    %118 = tpu.concatenate %116, %117 in 1 : vector<2x32xf32>, vector<2x32xf32> -> vector<2x64xf32>
    %cst_29 = arith.constant dense<0.000000e+00> : vector<2x128xf32>
    %119 = tpu.matmul %118, %3, %cst_29 {dimension_numbers = #tpu.dot_dimension_numbers<[1], [0], [0], [1], [0, 0, 1, 1], [], []>} : vector<2x64xf32>, vector<64x128xf32>, vector<2x128xf32> -> vector<2x128xf32>
    %120 = vector.broadcast %4 : vector<1x128xf32> to vector<2x128xf32>
    %121 = arith.addf %119, %120 : vector<2x128xf32>
    %122 = arith.negf %121 : vector<2x128xf32>
    %123 = math.exp %122 : vector<2x128xf32>
    %cst_30 = arith.constant 1.000000e+00 : f32
    %124 = vector.broadcast %cst_30 : f32 to vector<2x128xf32>
    %125 = arith.addf %124, %123 : vector<2x128xf32>
    %126 = arith.divf %124, %125 : vector<2x128xf32>
    %127 = math.tanh %121 : vector<2x128xf32>
    %c64_i32_31 = arith.constant 64 : i32
    %128 = tpu.dynamic_rotate %127 by %c64_i32_31 dim 1 : vector<2x128xf32>, i32 -> vector<2x128xf32>
    %129 = arith.mulf %126, %128 : vector<2x128xf32>
    %130 = arith.mulf %126, %92 : vector<2x128xf32>
    %131 = vector.extract_strided_slice %129 {offsets = [0, 96], sizes = [2, 32], strides = [1, 1]} : vector<2x128xf32> to vector<2x32xf32>
    %132 = vector.extract_strided_slice %129 {offsets = [0, 0], sizes = [2, 96], strides = [1, 1]} : vector<2x128xf32> to vector<2x96xf32>
    %133 = tpu.concatenate %131, %132 in 1 : vector<2x32xf32>, vector<2x96xf32> -> vector<2x128xf32>
    %134 = arith.addf %130, %133 : vector<2x128xf32>
    %135 = math.tanh %134 : vector<2x128xf32>
    %c64_i32_32 = arith.constant 64 : i32
    %136 = tpu.dynamic_rotate %135 by %c64_i32_32 dim 1 : vector<2x128xf32>, i32 -> vector<2x128xf32>
    %137 = arith.mulf %126, %136 : vector<2x128xf32>
    %138 = vector.extract_strided_slice %10 {offsets = [6, 0], sizes = [2, 128], strides = [1, 1]} : vector<16x128xf32> to vector<2x128xf32>
    %139 = vector.extract_strided_slice %115 {offsets = [0, 0], sizes = [2, 32], strides = [1, 1]} : vector<2x128xf32> to vector<2x32xf32>
    %cst_33 = arith.constant dense<0.000000e+00> : vector<2x128xf32>
    %140 = tpu.matmul %139, %2, %cst_33 {dimension_numbers = #tpu.dot_dimension_numbers<[1], [0], [0], [1], [0, 0, 1, 1], [], []>} : vector<2x32xf32>, vector<32x128xf32>, vector<2x128xf32> -> vector<2x128xf32>
    %141 = arith.addf %138, %140 : vector<2x128xf32>
    %142 = arith.negf %141 : vector<2x128xf32>
    %143 = math.exp %142 : vector<2x128xf32>
    %cst_34 = arith.constant 1.000000e+00 : f32
    %144 = vector.broadcast %cst_34 : f32 to vector<2x128xf32>
    %145 = arith.addf %144, %143 : vector<2x128xf32>
    %146 = arith.divf %144, %145 : vector<2x128xf32>
    %147 = math.tanh %141 : vector<2x128xf32>
    %c64_i32_35 = arith.constant 64 : i32
    %148 = tpu.dynamic_rotate %147 by %c64_i32_35 dim 1 : vector<2x128xf32>, i32 -> vector<2x128xf32>
    %149 = arith.mulf %146, %148 : vector<2x128xf32>
    %150 = arith.mulf %146, %112 : vector<2x128xf32>
    %151 = vector.extract_strided_slice %149 {offsets = [0, 96], sizes = [2, 32], strides = [1, 1]} : vector<2x128xf32> to vector<2x32xf32>
    %152 = vector.extract_strided_slice %149 {offsets = [0, 0], sizes = [2, 96], strides = [1, 1]} : vector<2x128xf32> to vector<2x96xf32>
    %153 = tpu.concatenate %151, %152 in 1 : vector<2x32xf32>, vector<2x96xf32> -> vector<2x128xf32>
    %154 = arith.addf %150, %153 : vector<2x128xf32>
    %155 = math.tanh %154 : vector<2x128xf32>
    %c64_i32_36 = arith.constant 64 : i32
    %156 = tpu.dynamic_rotate %155 by %c64_i32_36 dim 1 : vector<2x128xf32>, i32 -> vector<2x128xf32>
    %157 = arith.mulf %146, %156 : vector<2x128xf32>
    %158 = vector.extract_strided_slice %157 {offsets = [0, 0], sizes = [2, 32], strides = [1, 1]} : vector<2x128xf32> to vector<2x32xf32>
    %159 = vector.extract_strided_slice %137 {offsets = [0, 0], sizes = [2, 32], strides = [1, 1]} : vector<2x128xf32> to vector<2x32xf32>
    %160 = tpu.concatenate %158, %159 in 1 : vector<2x32xf32>, vector<2x32xf32> -> vector<2x64xf32>
    %cst_37 = arith.constant dense<0.000000e+00> : vector<2x128xf32>
    %161 = tpu.matmul %160, %3, %cst_37 {dimension_numbers = #tpu.dot_dimension_numbers<[1], [0], [0], [1], [0, 0, 1, 1], [], []>} : vector<2x64xf32>, vector<64x128xf32>, vector<2x128xf32> -> vector<2x128xf32>
    %162 = vector.broadcast %4 : vector<1x128xf32> to vector<2x128xf32>
    %163 = arith.addf %161, %162 : vector<2x128xf32>
    %164 = arith.negf %163 : vector<2x128xf32>
    %165 = math.exp %164 : vector<2x128xf32>
    %cst_38 = arith.constant 1.000000e+00 : f32
    %166 = vector.broadcast %cst_38 : f32 to vector<2x128xf32>
    %167 = arith.addf %166, %165 : vector<2x128xf32>
    %168 = arith.divf %166, %167 : vector<2x128xf32>
    %169 = math.tanh %163 : vector<2x128xf32>
    %c64_i32_39 = arith.constant 64 : i32
    %170 = tpu.dynamic_rotate %169 by %c64_i32_39 dim 1 : vector<2x128xf32>, i32 -> vector<2x128xf32>
    %171 = arith.mulf %168, %170 : vector<2x128xf32>
    %172 = arith.mulf %168, %134 : vector<2x128xf32>
    %173 = vector.extract_strided_slice %171 {offsets = [0, 96], sizes = [2, 32], strides = [1, 1]} : vector<2x128xf32> to vector<2x32xf32>
    %174 = vector.extract_strided_slice %171 {offsets = [0, 0], sizes = [2, 96], strides = [1, 1]} : vector<2x128xf32> to vector<2x96xf32>
    %175 = tpu.concatenate %173, %174 in 1 : vector<2x32xf32>, vector<2x96xf32> -> vector<2x128xf32>
    %176 = arith.addf %172, %175 : vector<2x128xf32>
    %177 = math.tanh %176 : vector<2x128xf32>
    %c64_i32_40 = arith.constant 64 : i32
    %178 = tpu.dynamic_rotate %177 by %c64_i32_40 dim 1 : vector<2x128xf32>, i32 -> vector<2x128xf32>
    %179 = arith.mulf %168, %178 : vector<2x128xf32>
    %180 = vector.extract_strided_slice %10 {offsets = [8, 0], sizes = [2, 128], strides = [1, 1]} : vector<16x128xf32> to vector<2x128xf32>
    %181 = vector.extract_strided_slice %157 {offsets = [0, 0], sizes = [2, 32], strides = [1, 1]} : vector<2x128xf32> to vector<2x32xf32>
    %cst_41 = arith.constant dense<0.000000e+00> : vector<2x128xf32>
    %182 = tpu.matmul %181, %2, %cst_41 {dimension_numbers = #tpu.dot_dimension_numbers<[1], [0], [0], [1], [0, 0, 1, 1], [], []>} : vector<2x32xf32>, vector<32x128xf32>, vector<2x128xf32> -> vector<2x128xf32>
    %183 = arith.addf %180, %182 : vector<2x128xf32>
    %184 = arith.negf %183 : vector<2x128xf32>
    %185 = math.exp %184 : vector<2x128xf32>
    %cst_42 = arith.constant 1.000000e+00 : f32
    %186 = vector.broadcast %cst_42 : f32 to vector<2x128xf32>
    %187 = arith.addf %186, %185 : vector<2x128xf32>
    %188 = arith.divf %186, %187 : vector<2x128xf32>
    %189 = math.tanh %183 : vector<2x128xf32>
    %c64_i32_43 = arith.constant 64 : i32
    %190 = tpu.dynamic_rotate %189 by %c64_i32_43 dim 1 : vector<2x128xf32>, i32 -> vector<2x128xf32>
    %191 = arith.mulf %188, %190 : vector<2x128xf32>
    %192 = arith.mulf %188, %154 : vector<2x128xf32>
    %193 = vector.extract_strided_slice %191 {offsets = [0, 96], sizes = [2, 32], strides = [1, 1]} : vector<2x128xf32> to vector<2x32xf32>
    %194 = vector.extract_strided_slice %191 {offsets = [0, 0], sizes = [2, 96], strides = [1, 1]} : vector<2x128xf32> to vector<2x96xf32>
    %195 = tpu.concatenate %193, %194 in 1 : vector<2x32xf32>, vector<2x96xf32> -> vector<2x128xf32>
    %196 = arith.addf %192, %195 : vector<2x128xf32>
    %197 = math.tanh %196 : vector<2x128xf32>
    %c64_i32_44 = arith.constant 64 : i32
    %198 = tpu.dynamic_rotate %197 by %c64_i32_44 dim 1 : vector<2x128xf32>, i32 -> vector<2x128xf32>
    %199 = arith.mulf %188, %198 : vector<2x128xf32>
    %200 = vector.extract_strided_slice %199 {offsets = [0, 0], sizes = [2, 32], strides = [1, 1]} : vector<2x128xf32> to vector<2x32xf32>
    %201 = vector.extract_strided_slice %179 {offsets = [0, 0], sizes = [2, 32], strides = [1, 1]} : vector<2x128xf32> to vector<2x32xf32>
    %202 = tpu.concatenate %200, %201 in 1 : vector<2x32xf32>, vector<2x32xf32> -> vector<2x64xf32>
    %cst_45 = arith.constant dense<0.000000e+00> : vector<2x128xf32>
    %203 = tpu.matmul %202, %3, %cst_45 {dimension_numbers = #tpu.dot_dimension_numbers<[1], [0], [0], [1], [0, 0, 1, 1], [], []>} : vector<2x64xf32>, vector<64x128xf32>, vector<2x128xf32> -> vector<2x128xf32>
    %204 = vector.broadcast %4 : vector<1x128xf32> to vector<2x128xf32>
    %205 = arith.addf %203, %204 : vector<2x128xf32>
    %206 = arith.negf %205 : vector<2x128xf32>
    %207 = math.exp %206 : vector<2x128xf32>
    %cst_46 = arith.constant 1.000000e+00 : f32
    %208 = vector.broadcast %cst_46 : f32 to vector<2x128xf32>
    %209 = arith.addf %208, %207 : vector<2x128xf32>
    %210 = arith.divf %208, %209 : vector<2x128xf32>
    %211 = math.tanh %205 : vector<2x128xf32>
    %c64_i32_47 = arith.constant 64 : i32
    %212 = tpu.dynamic_rotate %211 by %c64_i32_47 dim 1 : vector<2x128xf32>, i32 -> vector<2x128xf32>
    %213 = arith.mulf %210, %212 : vector<2x128xf32>
    %214 = arith.mulf %210, %176 : vector<2x128xf32>
    %215 = vector.extract_strided_slice %213 {offsets = [0, 96], sizes = [2, 32], strides = [1, 1]} : vector<2x128xf32> to vector<2x32xf32>
    %216 = vector.extract_strided_slice %213 {offsets = [0, 0], sizes = [2, 96], strides = [1, 1]} : vector<2x128xf32> to vector<2x96xf32>
    %217 = tpu.concatenate %215, %216 in 1 : vector<2x32xf32>, vector<2x96xf32> -> vector<2x128xf32>
    %218 = arith.addf %214, %217 : vector<2x128xf32>
    %219 = math.tanh %218 : vector<2x128xf32>
    %c64_i32_48 = arith.constant 64 : i32
    %220 = tpu.dynamic_rotate %219 by %c64_i32_48 dim 1 : vector<2x128xf32>, i32 -> vector<2x128xf32>
    %221 = arith.mulf %210, %220 : vector<2x128xf32>
    %222 = vector.extract_strided_slice %10 {offsets = [10, 0], sizes = [2, 128], strides = [1, 1]} : vector<16x128xf32> to vector<2x128xf32>
    %223 = vector.extract_strided_slice %199 {offsets = [0, 0], sizes = [2, 32], strides = [1, 1]} : vector<2x128xf32> to vector<2x32xf32>
    %cst_49 = arith.constant dense<0.000000e+00> : vector<2x128xf32>
    %224 = tpu.matmul %223, %2, %cst_49 {dimension_numbers = #tpu.dot_dimension_numbers<[1], [0], [0], [1], [0, 0, 1, 1], [], []>} : vector<2x32xf32>, vector<32x128xf32>, vector<2x128xf32> -> vector<2x128xf32>
    %225 = arith.addf %222, %224 : vector<2x128xf32>
    %226 = arith.negf %225 : vector<2x128xf32>
    %227 = math.exp %226 : vector<2x128xf32>
    %cst_50 = arith.constant 1.000000e+00 : f32
    %228 = vector.broadcast %cst_50 : f32 to vector<2x128xf32>
    %229 = arith.addf %228, %227 : vector<2x128xf32>
    %230 = arith.divf %228, %229 : vector<2x128xf32>
    %231 = math.tanh %225 : vector<2x128xf32>
    %c64_i32_51 = arith.constant 64 : i32
    %232 = tpu.dynamic_rotate %231 by %c64_i32_51 dim 1 : vector<2x128xf32>, i32 -> vector<2x128xf32>
    %233 = arith.mulf %230, %232 : vector<2x128xf32>
    %234 = arith.mulf %230, %196 : vector<2x128xf32>
    %235 = vector.extract_strided_slice %233 {offsets = [0, 96], sizes = [2, 32], strides = [1, 1]} : vector<2x128xf32> to vector<2x32xf32>
    %236 = vector.extract_strided_slice %233 {offsets = [0, 0], sizes = [2, 96], strides = [1, 1]} : vector<2x128xf32> to vector<2x96xf32>
    %237 = tpu.concatenate %235, %236 in 1 : vector<2x32xf32>, vector<2x96xf32> -> vector<2x128xf32>
    %238 = arith.addf %234, %237 : vector<2x128xf32>
    %239 = math.tanh %238 : vector<2x128xf32>
    %c64_i32_52 = arith.constant 64 : i32
    %240 = tpu.dynamic_rotate %239 by %c64_i32_52 dim 1 : vector<2x128xf32>, i32 -> vector<2x128xf32>
    %241 = arith.mulf %230, %240 : vector<2x128xf32>
    %242 = vector.extract_strided_slice %241 {offsets = [0, 0], sizes = [2, 32], strides = [1, 1]} : vector<2x128xf32> to vector<2x32xf32>
    %243 = vector.extract_strided_slice %221 {offsets = [0, 0], sizes = [2, 32], strides = [1, 1]} : vector<2x128xf32> to vector<2x32xf32>
    %244 = tpu.concatenate %242, %243 in 1 : vector<2x32xf32>, vector<2x32xf32> -> vector<2x64xf32>
    %cst_53 = arith.constant dense<0.000000e+00> : vector<2x128xf32>
    %245 = tpu.matmul %244, %3, %cst_53 {dimension_numbers = #tpu.dot_dimension_numbers<[1], [0], [0], [1], [0, 0, 1, 1], [], []>} : vector<2x64xf32>, vector<64x128xf32>, vector<2x128xf32> -> vector<2x128xf32>
    %246 = vector.broadcast %4 : vector<1x128xf32> to vector<2x128xf32>
    %247 = arith.addf %245, %246 : vector<2x128xf32>
    %248 = arith.negf %247 : vector<2x128xf32>
    %249 = math.exp %248 : vector<2x128xf32>
    %cst_54 = arith.constant 1.000000e+00 : f32
    %250 = vector.broadcast %cst_54 : f32 to vector<2x128xf32>
    %251 = arith.addf %250, %249 : vector<2x128xf32>
    %252 = arith.divf %250, %251 : vector<2x128xf32>
    %253 = math.tanh %247 : vector<2x128xf32>
    %c64_i32_55 = arith.constant 64 : i32
    %254 = tpu.dynamic_rotate %253 by %c64_i32_55 dim 1 : vector<2x128xf32>, i32 -> vector<2x128xf32>
    %255 = arith.mulf %252, %254 : vector<2x128xf32>
    %256 = arith.mulf %252, %218 : vector<2x128xf32>
    %257 = vector.extract_strided_slice %255 {offsets = [0, 96], sizes = [2, 32], strides = [1, 1]} : vector<2x128xf32> to vector<2x32xf32>
    %258 = vector.extract_strided_slice %255 {offsets = [0, 0], sizes = [2, 96], strides = [1, 1]} : vector<2x128xf32> to vector<2x96xf32>
    %259 = tpu.concatenate %257, %258 in 1 : vector<2x32xf32>, vector<2x96xf32> -> vector<2x128xf32>
    %260 = arith.addf %256, %259 : vector<2x128xf32>
    %261 = math.tanh %260 : vector<2x128xf32>
    %c64_i32_56 = arith.constant 64 : i32
    %262 = tpu.dynamic_rotate %261 by %c64_i32_56 dim 1 : vector<2x128xf32>, i32 -> vector<2x128xf32>
    %263 = arith.mulf %252, %262 : vector<2x128xf32>
    %264 = vector.extract_strided_slice %10 {offsets = [12, 0], sizes = [2, 128], strides = [1, 1]} : vector<16x128xf32> to vector<2x128xf32>
    %265 = vector.extract_strided_slice %241 {offsets = [0, 0], sizes = [2, 32], strides = [1, 1]} : vector<2x128xf32> to vector<2x32xf32>
    %cst_57 = arith.constant dense<0.000000e+00> : vector<2x128xf32>
    %266 = tpu.matmul %265, %2, %cst_57 {dimension_numbers = #tpu.dot_dimension_numbers<[1], [0], [0], [1], [0, 0, 1, 1], [], []>} : vector<2x32xf32>, vector<32x128xf32>, vector<2x128xf32> -> vector<2x128xf32>
    %267 = arith.addf %264, %266 : vector<2x128xf32>
    %268 = arith.negf %267 : vector<2x128xf32>
    %269 = math.exp %268 : vector<2x128xf32>
    %cst_58 = arith.constant 1.000000e+00 : f32
    %270 = vector.broadcast %cst_58 : f32 to vector<2x128xf32>
    %271 = arith.addf %270, %269 : vector<2x128xf32>
    %272 = arith.divf %270, %271 : vector<2x128xf32>
    %273 = math.tanh %267 : vector<2x128xf32>
    %c64_i32_59 = arith.constant 64 : i32
    %274 = tpu.dynamic_rotate %273 by %c64_i32_59 dim 1 : vector<2x128xf32>, i32 -> vector<2x128xf32>
    %275 = arith.mulf %272, %274 : vector<2x128xf32>
    %276 = arith.mulf %272, %238 : vector<2x128xf32>
    %277 = vector.extract_strided_slice %275 {offsets = [0, 96], sizes = [2, 32], strides = [1, 1]} : vector<2x128xf32> to vector<2x32xf32>
    %278 = vector.extract_strided_slice %275 {offsets = [0, 0], sizes = [2, 96], strides = [1, 1]} : vector<2x128xf32> to vector<2x96xf32>
    %279 = tpu.concatenate %277, %278 in 1 : vector<2x32xf32>, vector<2x96xf32> -> vector<2x128xf32>
    %280 = arith.addf %276, %279 : vector<2x128xf32>
    %281 = math.tanh %280 : vector<2x128xf32>
    %c64_i32_60 = arith.constant 64 : i32
    %282 = tpu.dynamic_rotate %281 by %c64_i32_60 dim 1 : vector<2x128xf32>, i32 -> vector<2x128xf32>
    %283 = arith.mulf %272, %282 : vector<2x128xf32>
    %284 = vector.extract_strided_slice %283 {offsets = [0, 0], sizes = [2, 32], strides = [1, 1]} : vector<2x128xf32> to vector<2x32xf32>
    %285 = vector.extract_strided_slice %263 {offsets = [0, 0], sizes = [2, 32], strides = [1, 1]} : vector<2x128xf32> to vector<2x32xf32>
    %286 = tpu.concatenate %284, %285 in 1 : vector<2x32xf32>, vector<2x32xf32> -> vector<2x64xf32>
    %cst_61 = arith.constant dense<0.000000e+00> : vector<2x128xf32>
    %287 = tpu.matmul %286, %3, %cst_61 {dimension_numbers = #tpu.dot_dimension_numbers<[1], [0], [0], [1], [0, 0, 1, 1], [], []>} : vector<2x64xf32>, vector<64x128xf32>, vector<2x128xf32> -> vector<2x128xf32>
    %288 = vector.broadcast %4 : vector<1x128xf32> to vector<2x128xf32>
    %289 = arith.addf %287, %288 : vector<2x128xf32>
    %290 = arith.negf %289 : vector<2x128xf32>
    %291 = math.exp %290 : vector<2x128xf32>
    %cst_62 = arith.constant 1.000000e+00 : f32
    %292 = vector.broadcast %cst_62 : f32 to vector<2x128xf32>
    %293 = arith.addf %292, %291 : vector<2x128xf32>
    %294 = arith.divf %292, %293 : vector<2x128xf32>
    %295 = math.tanh %289 : vector<2x128xf32>
    %c64_i32_63 = arith.constant 64 : i32
    %296 = tpu.dynamic_rotate %295 by %c64_i32_63 dim 1 : vector<2x128xf32>, i32 -> vector<2x128xf32>
    %297 = arith.mulf %294, %296 : vector<2x128xf32>
    %298 = arith.mulf %294, %260 : vector<2x128xf32>
    %299 = vector.extract_strided_slice %297 {offsets = [0, 96], sizes = [2, 32], strides = [1, 1]} : vector<2x128xf32> to vector<2x32xf32>
    %300 = vector.extract_strided_slice %297 {offsets = [0, 0], sizes = [2, 96], strides = [1, 1]} : vector<2x128xf32> to vector<2x96xf32>
    %301 = tpu.concatenate %299, %300 in 1 : vector<2x32xf32>, vector<2x96xf32> -> vector<2x128xf32>
    %302 = arith.addf %298, %301 : vector<2x128xf32>
    %303 = math.tanh %302 : vector<2x128xf32>
    %c64_i32_64 = arith.constant 64 : i32
    %304 = tpu.dynamic_rotate %303 by %c64_i32_64 dim 1 : vector<2x128xf32>, i32 -> vector<2x128xf32>
    %305 = arith.mulf %294, %304 : vector<2x128xf32>
    %306 = vector.extract_strided_slice %10 {offsets = [14, 0], sizes = [2, 128], strides = [1, 1]} : vector<16x128xf32> to vector<2x128xf32>
    %307 = vector.extract_strided_slice %283 {offsets = [0, 0], sizes = [2, 32], strides = [1, 1]} : vector<2x128xf32> to vector<2x32xf32>
    %cst_65 = arith.constant dense<0.000000e+00> : vector<2x128xf32>
    %308 = tpu.matmul %307, %2, %cst_65 {dimension_numbers = #tpu.dot_dimension_numbers<[1], [0], [0], [1], [0, 0, 1, 1], [], []>} : vector<2x32xf32>, vector<32x128xf32>, vector<2x128xf32> -> vector<2x128xf32>
    %309 = arith.addf %306, %308 : vector<2x128xf32>
    %310 = arith.negf %309 : vector<2x128xf32>
    %311 = math.exp %310 : vector<2x128xf32>
    %cst_66 = arith.constant 1.000000e+00 : f32
    %312 = vector.broadcast %cst_66 : f32 to vector<2x128xf32>
    %313 = arith.addf %312, %311 : vector<2x128xf32>
    %314 = arith.divf %312, %313 : vector<2x128xf32>
    %315 = math.tanh %309 : vector<2x128xf32>
    %c64_i32_67 = arith.constant 64 : i32
    %316 = tpu.dynamic_rotate %315 by %c64_i32_67 dim 1 : vector<2x128xf32>, i32 -> vector<2x128xf32>
    %317 = arith.mulf %314, %316 : vector<2x128xf32>
    %318 = arith.mulf %314, %280 : vector<2x128xf32>
    %319 = vector.extract_strided_slice %317 {offsets = [0, 96], sizes = [2, 32], strides = [1, 1]} : vector<2x128xf32> to vector<2x32xf32>
    %320 = vector.extract_strided_slice %317 {offsets = [0, 0], sizes = [2, 96], strides = [1, 1]} : vector<2x128xf32> to vector<2x96xf32>
    %321 = tpu.concatenate %319, %320 in 1 : vector<2x32xf32>, vector<2x96xf32> -> vector<2x128xf32>
    %322 = arith.addf %318, %321 : vector<2x128xf32>
    %323 = math.tanh %322 : vector<2x128xf32>
    %c64_i32_68 = arith.constant 64 : i32
    %324 = tpu.dynamic_rotate %323 by %c64_i32_68 dim 1 : vector<2x128xf32>, i32 -> vector<2x128xf32>
    %325 = arith.mulf %314, %324 : vector<2x128xf32>
    %326 = vector.extract_strided_slice %325 {offsets = [0, 0], sizes = [2, 32], strides = [1, 1]} : vector<2x128xf32> to vector<2x32xf32>
    %327 = vector.extract_strided_slice %305 {offsets = [0, 0], sizes = [2, 32], strides = [1, 1]} : vector<2x128xf32> to vector<2x32xf32>
    %328 = tpu.concatenate %326, %327 in 1 : vector<2x32xf32>, vector<2x32xf32> -> vector<2x64xf32>
    %cst_69 = arith.constant dense<0.000000e+00> : vector<2x128xf32>
    %329 = tpu.matmul %328, %3, %cst_69 {dimension_numbers = #tpu.dot_dimension_numbers<[1], [0], [0], [1], [0, 0, 1, 1], [], []>} : vector<2x64xf32>, vector<64x128xf32>, vector<2x128xf32> -> vector<2x128xf32>
    %330 = vector.broadcast %4 : vector<1x128xf32> to vector<2x128xf32>
    %331 = arith.addf %329, %330 : vector<2x128xf32>
    %332 = arith.negf %331 : vector<2x128xf32>
    %333 = math.exp %332 : vector<2x128xf32>
    %cst_70 = arith.constant 1.000000e+00 : f32
    %334 = vector.broadcast %cst_70 : f32 to vector<2x128xf32>
    %335 = arith.addf %334, %333 : vector<2x128xf32>
    %336 = arith.divf %334, %335 : vector<2x128xf32>
    %337 = math.tanh %331 : vector<2x128xf32>
    %c64_i32_71 = arith.constant 64 : i32
    %338 = tpu.dynamic_rotate %337 by %c64_i32_71 dim 1 : vector<2x128xf32>, i32 -> vector<2x128xf32>
    %339 = arith.mulf %336, %338 : vector<2x128xf32>
    %340 = arith.mulf %336, %302 : vector<2x128xf32>
    %341 = vector.extract_strided_slice %339 {offsets = [0, 96], sizes = [2, 32], strides = [1, 1]} : vector<2x128xf32> to vector<2x32xf32>
    %342 = vector.extract_strided_slice %339 {offsets = [0, 0], sizes = [2, 96], strides = [1, 1]} : vector<2x128xf32> to vector<2x96xf32>
    %343 = tpu.concatenate %341, %342 in 1 : vector<2x32xf32>, vector<2x96xf32> -> vector<2x128xf32>
    %344 = arith.addf %340, %343 : vector<2x128xf32>
    %345 = math.tanh %344 : vector<2x128xf32>
    %c64_i32_72 = arith.constant 64 : i32
    %346 = tpu.dynamic_rotate %345 by %c64_i32_72 dim 1 : vector<2x128xf32>, i32 -> vector<2x128xf32>
    %347 = arith.mulf %336, %346 : vector<2x128xf32>
    %348 = vector.extract_strided_slice %347 {offsets = [0, 0], sizes = [2, 32], strides = [1, 1]} : vector<2x128xf32> to vector<2x32xf32>
    %cst_73 = arith.constant dense<0.000000e+00> : vector<2x128xf32>
    %349 = tpu.matmul %348, %5, %cst_73 {dimension_numbers = #tpu.dot_dimension_numbers<[1], [0], [0], [1], [0, 0, 1, 1], [], []>} : vector<2x32xf32>, vector<32x128xf32>, vector<2x128xf32> -> vector<2x128xf32>
    %350 = vector.broadcast %6 : vector<1x128xf32> to vector<2x128xf32>
    %351 = arith.addf %349, %350 : vector<2x128xf32>
    %c0_74 = arith.constant 0 : index
    %c0_75 = arith.constant 0 : index
    %352 = vector.load %arg2[%c0_74, %c0_75] : memref<2x128xf32, #tpu.memory_space<vmem>>, vector<2x128xf32>
    tpu.vector_store %arg2[%c0_74, %c0_75], %351 {strides = array<i32>} : memref<2x128xf32, #tpu.memory_space<vmem>>, vector<2x128xf32>,
    return
  }
}

</mosaic_0001>

<llo_original>
// kernel: siamese_lstm_forward.1
$region0: #{siamese_lstm_forward.1}
  #allocation0 [shape = 'u32[]', space=smem, size = 0x4, offset = 0x4, fixed_abs, tag = 'smem constant byte address 0x4 - core index']
  #allocation1 [shape = 'u32[144,128]{1,0:T(1,128)}', space=vmem, size = 0x12000, scoped, tag = 'internal scratch']
  %s0 = inlined_call_operand.vmem [shape: f32[16,16], index: 0, kind: input, shape index: {}]
  %s1 = inlined_call_operand.hbm [shape: f32[168,128], index: 1, kind: input, shape index: {}]
  %s2 = inlined_call_operand.vmem [shape: f32[2,128], index: 2, kind: output, shape index: {}]
  %s3 = sld [smem:[#allocation0]]
  $region22: #{siamese_lstm_forward.1} parent=0
    _
  %s5 = ssub.s32 1, %s3
  %s6 = scalar_select 0, %s5, %s3
  $region1: #{siamese_lstm_forward.1} parent=0
    #allocation2 [shape = 'u8[86016]{0}', space=vmem, size = 0x15000, scoped, tag = 'input window, operand 1, single buffered']
    #allocation3 [shape = 's32[1]{0}', space=sflag, size = 0x4, scoped, tag = 'scoped memory for siamese_lstm_forward.1']
    %7 = vsyncpa [#allocation3], 0
    // Predicated region
    $region2: #{siamese_lstm_forward.1} parent=1 // pred_check
      _
    $region3: #{siamese_lstm_forward.1} parent=1 // pred_check_branch
      %9 = sbr.rel (0) target = $region5
    $region4: #{siamese_lstm_forward.1} parent=1 // pred_region
      _
    $region5: #{siamese_lstm_forward.1} parent=1 // pred_fallthru
      _
    // Predicated region
    $region6: #{siamese_lstm_forward.1} parent=1 // pred_check
      _
    $region7: #{siamese_lstm_forward.1} parent=1 // pred_check_branch
      %11 = sbr.rel (0) target = $region9
    $region8: #{siamese_lstm_forward.1} parent=1 // pred_region
      %s13 = ssub.s32 2688, 2688
      %14 = vsyncadd [#allocation3], %s13
      %s15 = sshll.u32 [#allocation2], 4
      %s16 = int_to_ptr.vmem [resolvable:$true] %s15
      %21 = dma.hbm_to_vmem [thread:$0]  %s1, 2688, %s16, [#allocation3], 128, 128, 8
    $region9: #{siamese_lstm_forward.1} parent=1 // pred_fallthru
      _
    // Predicated region
    $region10: #{siamese_lstm_forward.1} parent=1 // pred_check
      _
    $region11: #{siamese_lstm_forward.1} parent=1 // pred_check_branch
      %23 = sbr.rel (0) target = $region13
    $region12: #{siamese_lstm_forward.1} parent=1 // pred_region
      %24 = dma.done [#allocation3], 2688
    $region13: #{siamese_lstm_forward.1} parent=1 // pred_fallthru
      _
    %v25 = vld [vmem:[#allocation2] sm:$0xff]
    %v26 = vld [vmem:[#allocation2 + $0x8] sm:$0xff]
    %v27 = vld [vmem:[#allocation2 + $0x10] sm:$0x1]
    %v28 = vld [vmem:[#allocation2 + $0x18] sm:$0xff]
    %v29 = vld [vmem:[#allocation2 + $0x20] sm:$0xff]
    %v30 = vld [vmem:[#allocation2 + $0x28] sm:$0xff]
    %v31 = vld [vmem:[#allocation2 + $0x30] sm:$0xff]
    %v32 = vld [vmem:[#allocation2 + $0x38] sm:$0xff]
    %v33 = vld [vmem:[#allocation2 + $0x40] sm:$0xff]
    %v34 = vld [vmem:[#allocation2 + $0x48] sm:$0xff]
    %v35 = vld [vmem:[#allocation2 + $0x50] sm:$0xff]
    %v36 = vld [vmem:[#allocation2 + $0x58] sm:$0xff]
    %v37 = vld [vmem:[#allocation2 + $0x60] sm:$0xff]
    %v38 = vld [vmem:[#allocation2 + $0x68] sm:$0xff]
    %v39 = vld [vmem:[#allocation2 + $0x70] sm:$0xff]
    %v40 = vld [vmem:[#allocation2 + $0x78] sm:$0x1]
    %v41 = vld [vmem:[#allocation2 + $0x80] sm:$0xff]
    %v42 = vld [vmem:[#allocation2 + $0x88] sm:$0xff]
    %v43 = vld [vmem:[#allocation2 + $0x90] sm:$0xff]
    %v44 = vld [vmem:[#allocation2 + $0x98] sm:$0xff]
    %v45 = vld [vmem:[#allocation2 + $0xa0] sm:$0x1]
    %v46 = vld [vmem:[%s0] sm:$0xff]
    %v47 = vld [vmem:[%s0 + $0x8] sm:$0xff]
    %v48 = vlaneseq
    %v49 = vshrl.u32 %v48, 7
    %v50 = vsub.s32 0, %v49
    %v51 = vrot.slane %v27, %v50
    %vm52 = vcmask 130048
    %v54 = vsel %vm52, %v46, 0
    %v57 = vsel %vm52, %v47, 0
    %59 = vmatprep.subr.mxu0 0.0
    %60 = vmatpush1.msra.mxu0 %v25
    %61 = vmatprep.subr.mxu0 0.0
    %62 = vmatpush1.msra.mxu0 %v26
    %63 = vmatprep.subr.mxu0 0.0
    %64 = vmatpush1.msra.mxu0 0.0
    %65 = vmatprep.subr.mxu0 0.0
    %66 = vmatpush1.msra.mxu0 0.0
    %67 = vmatprep.subr.mxu0 0.0
    %68 = vmatpush1.msra.mxu0 0.0
    %69 = vmatprep.subr.mxu0 0.0
    %70 = vmatpush1.msra.mxu0 0.0
    %71 = vmatprep.subr.mxu0 0.0
    %72 = vmatpush1.msra.mxu0 0.0
    %73 = vmatprep.subr.mxu0 0.0
    %74 = vmatpush1.msra.mxu0 0.0
    %75 = vmatprep.subr.mxu0 0.0
    %76 = vmatpush1.msra.mxu0 0.0
    %77 = vmatprep.subr.mxu0 0.0
    %78 = vmatpush1.msra.mxu0 0.0
    %79 = vmatprep.subr.mxu0 0.0
    %80 = vmatpush1.msra.mxu0 0.0
    %81 = vmatprep.subr.mxu0 0.0
    %82 = vmatpush1.msra.mxu0 0.0
    %83 = vmatprep.subr.mxu0 0.0
    %84 = vmatpush1.msra.mxu0 0.0
    %85 = vmatprep.subr.mxu0 0.0
    %86 = vmatpush1.msra.mxu0 0.0
    %87 = vmatprep.subr.mxu0 0.0
    %88 = vmatpush1.msra.mxu0 0.0
    %89 = vmatprep.subr.mxu0 0.0
    %90 = vmatpush1.msra.mxu0 0.0
    %91 = vmatprep.subr.mxu0 0.0
    %92 = vmatpush1.msra.mxu0 0.0
    %93 = vmatprep.subr.mxu0 0.0
    %94 = vmatpush1.msra.mxu0 0.0
    %95 = vmatprep.subr.mxu0 0.0
    %96 = vmatpush1.msra.mxu0 0.0
    %97 = vmatprep.subr.mxu0 0.0
    %98 = vmatpush1.msra.mxu0 0.0
    %99 = vmatprep.subr.mxu0 0.0
    %100 = vmatpush1.msra.mxu0 0.0
    %101 = vmatprep.subr.mxu0 0.0
    %102 = vmatpush1.msra.mxu0 0.0
    %103 = vmatprep.subr.mxu0 0.0
    %104 = vmatpush1.msra.mxu0 0.0
    %105 = vmatprep.subr.mxu0 0.0
    %106 = vmatpush1.msra.mxu0 0.0
    %107 = vmatprep.subr.mxu0 0.0
    %108 = vmatpush1.msra.mxu0 0.0
    %109 = vmatprep.subr.mxu0 0.0
    %110 = vmatpush1.msra.mxu0 0.0
    %111 = vmatprep.subr.mxu0 0.0
    %112 = vmatpush1.msra.mxu0 0.0
    %113 = vmatprep.subr.mxu0 0.0
    %114 = vmatpush1.msra.mxu0 0.0
    %115 = vmatprep.subr.mxu0 0.0
    %116 = vmatpush1.msra.mxu0 0.0
    %117 = vmatprep.subr.mxu0 0.0
    %118 = vmatpush1.msra.mxu0 0.0
    %119 = vmatprep.subr.mxu0 0.0
    %120 = vmatpush1.msra.mxu0 0.0
    %121 = vmatprep.subr.mxu0 0.0
    %122 = vmatpush1.msra.mxu0 0.0
    %123 = vmatprep.mubr.f32.mxu0 0.0
    %124 = vmatmul.mubr.f32.gmra.mrb[0].mxu0 %v54
    %v125 = vpop.f32.mrb[0].mxu0
    %v126 = vadd.f32 %v51, %v125
    %v127 = vpop.f32.mrb[0].mxu0
    %128 = vmatprep.mubr.f32.mxu0 0.0
    %129 = vmatmul.mubr.f32.gmra.mrb[0].mxu0 %v57
    %v130 = vpop.f32.mrb[0].mxu0
    %v131 = vadd.f32 %v51, %v130
    %v132 = vpop.f32.mrb[0].mxu0
    %133 = vdwg.mxu0
    %vm134 = vcmask 261120
    %v136 = vsel %vm134, 0.0, 0
    %138 = vmatprep.subr.mxu0 0.0
    %139 = vmatpush1.msra.mxu0 %v28
    %140 = vmatprep.subr.mxu0 0.0
    %141 = vmatpush1.msra.mxu0 %v29
    %142 = vmatprep.subr.mxu0 0.0
    %143 = vmatpush1.msra.mxu0 %v30
    %144 = vmatprep.subr.mxu0 0.0
    %145 = vmatpush1.msra.mxu0 %v31
    %146 = vmatprep.subr.mxu0 0.0
    %147 = vmatpush1.msra.mxu0 0.0
    %148 = vmatprep.subr.mxu0 0.0
    %149 = vmatpush1.msra.mxu0 0.0
    %150 = vmatprep.subr.mxu0 0.0
    %151 = vmatpush1.msra.mxu0 0.0
    %152 = vmatprep.subr.mxu0 0.0
    %153 = vmatpush1.msra.mxu0 0.0
    %154 = vmatprep.subr.mxu0 0.0
    %155 = vmatpush1.msra.mxu0 0.0
    %156 = vmatprep.subr.mxu0 0.0
    %157 = vmatpush1.msra.mxu0 0.0
    %158 = vmatprep.subr.mxu0 0.0
    %159 = vmatpush1.msra.mxu0 0.0
    %160 = vmatprep.subr.mxu0 0.0
    %161 = vmatpush1.msra.mxu0 0.0
    %162 = vmatprep.subr.mxu0 0.0
    %163 = vmatpush1.msra.mxu0 0.0
    %164 = vmatprep.subr.mxu0 0.0
    %165 = vmatpush1.msra.mxu0 0.0
    %166 = vmatprep.subr.mxu0 0.0
    %167 = vmatpush1.msra.mxu0 0.0
    %168 = vmatprep.subr.mxu0 0.0
    %169 = vmatpush1.msra.mxu0 0.0
    %170 = vmatprep.subr.mxu0 0.0
    %171 = vmatpush1.msra.mxu0 0.0
    %172 = vmatprep.subr.mxu0 0.0
    %173 = vmatpush1.msra.mxu0 0.0
    %174 = vmatprep.subr.mxu0 0.0
    %175 = vmatpush1.msra.mxu0 0.0
    %176 = vmatprep.subr.mxu0 0.0
    %177 = vmatpush1.msra.mxu0 0.0
    %178 = vmatprep.subr.mxu0 0.0
    %179 = vmatpush1.msra.mxu0 0.0
    %180 = vmatprep.subr.mxu0 0.0
    %181 = vmatpush1.msra.mxu0 0.0
    %182 = vmatprep.subr.mxu0 0.0
    %183 = vmatpush1.msra.mxu0 0.0
    %184 = vmatprep.subr.mxu0 0.0
    %185 = vmatpush1.msra.mxu0 0.0
    %186 = vmatprep.subr.mxu0 0.0
    %187 = vmatpush1.msra.mxu0 0.0
    %188 = vmatprep.subr.mxu0 0.0
    %189 = vmatpush1.msra.mxu0 0.0
    %190 = vmatprep.subr.mxu0 0.0
    %191 = vmatpush1.msra.mxu0 0.0
    %192 = vmatprep.subr.mxu0 0.0
    %193 = vmatpush1.msra.mxu0 0.0
    %194 = vmatprep.subr.mxu0 0.0
    %195 = vmatpush1.msra.mxu0 0.0
    %196 = vmatprep.subr.mxu0 0.0
    %197 = vmatpush1.msra.mxu0 0.0
    %198 = vmatprep.subr.mxu0 0.0
    %199 = vmatpush1.msra.mxu0 0.0
    %200 = vmatprep.subr.mxu0 0.0
    %201 = vmatpush1.msra.mxu0 0.0
    %202 = vmatprep.mubr.f32.mxu0 0.0
    %203 = vmatmul.mubr.f32.gmra.mrb[0].mxu0 %v136
    %v204 = vpop.f32.mrb[0].mxu0
    %v205 = vadd.f32 0.0, %v204
    %v206 = vpop.f32.mrb[0].mxu0
    %207 = vdwg.mxu0
    %v208 = vadd.f32 %v126, %v205
    %v209 = vxor.u32 %v208, 2147483648
    %v210 = vmul.f32 %v209, 1.442695
    %v211 = vpow.pop %v210
    %v212 = vadd.f32 %v211, 1.0
    %v213 = vrcp.pop %v212
    %v214 = vmul.f32 1.0, %v213
    %v215 = vtanh.pop %v208
    %216 = vrot.lane.b32.xlu0 %v215, 64
    %v217 = vpop.permute.xlu0 %216
    %v218 = vmul.f32 %v214, %v217
    %v219 = vmul.f32 %v214, 0.0
    %221 = vrot.lane.b32.xlu0 %v218, 32
    %v222 = vpop.permute.xlu0 %221
    %v224 = vadd.f32 %v219, %v222
    %v225 = vtanh.pop %v224
    %226 = vrot.lane.b32.xlu0 %v225, 64
    %v227 = vpop.permute.xlu0 %226
    %v228 = vmul.f32 %v214, %v227
    %v229 = vsel %vm134, %v228, 0.0
    %v230 = vlaneseq
    %v231 = vshrl.u32 %v230, 7
    %v232 = vsub.s32 0, %v231
    %v233 = vrot.slane %v40, %v232
    %vm234 = vcmask 523264
    %v236 = vsel %vm234, %v229, 0
    %238 = vmatprep.subr.mxu0 0.0
    %239 = vmatpush1.msra.mxu0 %v32
    %240 = vmatprep.subr.mxu0 0.0
    %241 = vmatpush1.msra.mxu0 %v33
    %242 = vmatprep.subr.mxu0 0.0
    %243 = vmatpush1.msra.mxu0 %v34
    %244 = vmatprep.subr.mxu0 0.0
    %245 = vmatpush1.msra.mxu0 %v35
    %246 = vmatprep.subr.mxu0 0.0
    %247 = vmatpush1.msra.mxu0 %v36
    %248 = vmatprep.subr.mxu0 0.0
    %249 = vmatpush1.msra.mxu0 %v37
    %250 = vmatprep.subr.mxu0 0.0
    %251 = vmatpush1.msra.mxu0 %v38
    %252 = vmatprep.subr.mxu0 0.0
    %253 = vmatpush1.msra.mxu0 %v39
    %254 = vmatprep.subr.mxu0 0.0
    %255 = vmatpush1.msra.mxu0 0.0
    %256 = vmatprep.subr.mxu0 0.0
    %257 = vmatpush1.msra.mxu0 0.0
    %258 = vmatprep.subr.mxu0 0.0
    %259 = vmatpush1.msra.mxu0 0.0
    %260 = vmatprep.subr.mxu0 0.0
    %261 = vmatpush1.msra.mxu0 0.0
    %262 = vmatprep.subr.mxu0 0.0
    %263 = vmatpush1.msra.mxu0 0.0
    %264 = vmatprep.subr.mxu0 0.0
    %265 = vmatpush1.msra.mxu0 0.0
    %266 = vmatprep.subr.mxu0 0.0
    %267 = vmatpush1.msra.mxu0 0.0
    %268 = vmatprep.subr.mxu0 0.0
    %269 = vmatpush1.msra.mxu0 0.0
    %270 = vmatprep.subr.mxu0 0.0
    %271 = vmatpush1.msra.mxu0 0.0
    %272 = vmatprep.subr.mxu0 0.0
    %273 = vmatpush1.msra.mxu0 0.0
    %274 = vmatprep.subr.mxu0 0.0
    %275 = vmatpush1.msra.mxu0 0.0
    %276 = vmatprep.subr.mxu0 0.0
    %277 = vmatpush1.msra.mxu0 0.0
    %278 = vmatprep.subr.mxu0 0.0
    %279 = vmatpush1.msra.mxu0 0.0
    %280 = vmatprep.subr.mxu0 0.0
    %281 = vmatpush1.msra.mxu0 0.0
    %282 = vmatprep.subr.mxu0 0.0
    %283 = vmatpush1.msra.mxu0 0.0
    %284 = vmatprep.subr.mxu0 0.0
    %285 = vmatpush1.msra.mxu0 0.0
    %286 = vmatprep.subr.mxu0 0.0
    %287 = vmatpush1.msra.mxu0 0.0
    %288 = vmatprep.subr.mxu0 0.0
    %289 = vmatpush1.msra.mxu0 0.0
    %290 = vmatprep.subr.mxu0 0.0
    %291 = vmatpush1.msra.mxu0 0.0
    %292 = vmatprep.subr.mxu0 0.0
    %293 = vmatpush1.msra.mxu0 0.0
    %294 = vmatprep.subr.mxu0 0.0
    %295 = vmatpush1.msra.mxu0 0.0
    %296 = vmatprep.subr.mxu0 0.0
    %297 = vmatpush1.msra.mxu0 0.0
    %298 = vmatprep.subr.mxu0 0.0
    %299 = vmatpush1.msra.mxu0 0.0
    %300 = vmatprep.subr.mxu0 0.0
    %301 = vmatpush1.msra.mxu0 0.0
    %302 = vmatprep.mubr.f32.mxu0 0.0
    %303 = vmatmul.mubr.f32.gmra.mrb[0].mxu0 %v236
    %v304 = vpop.f32.mrb[0].mxu0
    %v305 = vadd.f32 %v233, %v304
    %v306 = vpop.f32.mrb[0].mxu0
    %307 = vdwg.mxu0
    %v308 = vxor.u32 %v305, 2147483648
    %v309 = vmul.f32 %v308, 1.442695
    %v310 = vpow.pop %v309
    %v311 = vadd.f32 %v310, 1.0
    %v312 = vrcp.pop %v311
    %v313 = vmul.f32 1.0, %v312
    %v314 = vtanh.pop %v305
    %315 = vrot.lane.b32.xlu0 %v314, 64
    %v316 = vpop.permute.xlu0 %315
    %v317 = vmul.f32 %v313, %v316
    %v318 = vmul.f32 %v313, 0.0
    %320 = vrot.lane.b32.xlu0 %v317, 32
    %v321 = vpop.permute.xlu0 %320
    %v323 = vadd.f32 %v318, %v321
    %v324 = vtanh.pop %v323
    %325 = vrot.lane.b32.xlu0 %v324, 64
    %v326 = vpop.permute.xlu0 %325
    %v327 = vmul.f32 %v313, %v326
    %v329 = vsel %vm134, %v228, 0
    %331 = vmatprep.subr.mxu0 0.0
    %332 = vmatpush1.msra.mxu0 %v28
    %333 = vmatprep.subr.mxu0 0.0
    %334 = vmatpush1.msra.mxu0 %v29
    %335 = vmatprep.subr.mxu0 0.0
    %336 = vmatpush1.msra.mxu0 %v30
    %337 = vmatprep.subr.mxu0 0.0
    %338 = vmatpush1.msra.mxu0 %v31
    %339 = vmatprep.subr.mxu0 0.0
    %340 = vmatpush1.msra.mxu0 0.0
    %341 = vmatprep.subr.mxu0 0.0
    %342 = vmatpush1.msra.mxu0 0.0
    %343 = vmatprep.subr.mxu0 0.0
    %344 = vmatpush1.msra.mxu0 0.0
    %345 = vmatprep.subr.mxu0 0.0
    %346 = vmatpush1.msra.mxu0 0.0
    %347 = vmatprep.subr.mxu0 0.0
    %348 = vmatpush1.msra.mxu0 0.0
    %349 = vmatprep.subr.mxu0 0.0
    %350 = vmatpush1.msra.mxu0 0.0
    %351 = vmatprep.subr.mxu0 0.0
    %352 = vmatpush1.msra.mxu0 0.0
    %353 = vmatprep.subr.mxu0 0.0
    %354 = vmatpush1.msra.mxu0 0.0
    %355 = vmatprep.subr.mxu0 0.0
    %356 = vmatpush1.msra.mxu0 0.0
    %357 = vmatprep.subr.mxu0 0.0
    %358 = vmatpush1.msra.mxu0 0.0
    %359 = vmatprep.subr.mxu0 0.0
    %360 = vmatpush1.msra.mxu0 0.0
    %361 = vmatprep.subr.mxu0 0.0
    %362 = vmatpush1.msra.mxu0 0.0
    %363 = vmatprep.subr.mxu0 0.0
    %364 = vmatpush1.msra.mxu0 0.0
    %365 = vmatprep.subr.mxu0 0.0
    %366 = vmatpush1.msra.mxu0 0.0
    %367 = vmatprep.subr.mxu0 0.0
    %368 = vmatpush1.msra.mxu0 0.0
    %369 = vmatprep.subr.mxu0 0.0
    %370 = vmatpush1.msra.mxu0 0.0
    %371 = vmatprep.subr.mxu0 0.0
    %372 = vmatpush1.msra.mxu0 0.0
    %373 = vmatprep.subr.mxu0 0.0
    %374 = vmatpush1.msra.mxu0 0.0
    %375 = vmatprep.subr.mxu0 0.0
    %376 = vmatpush1.msra.mxu0 0.0
    %377 = vmatprep.subr.mxu0 0.0
    %378 = vmatpush1.msra.mxu0 0.0
    %379 = vmatprep.subr.mxu0 0.0
    %380 = vmatpush1.msra.mxu0 0.0
    %381 = vmatprep.subr.mxu0 0.0
    %382 = vmatpush1.msra.mxu0 0.0
    %383 = vmatprep.subr.mxu0 0.0
    %384 = vmatpush1.msra.mxu0 0.0
    %385 = vmatprep.subr.mxu0 0.0
    %386 = vmatpush1.msra.mxu0 0.0
    %387 = vmatprep.subr.mxu0 0.0
    %388 = vmatpush1.msra.mxu0 0.0
    %389 = vmatprep.subr.mxu0 0.0
    %390 = vmatpush1.msra.mxu0 0.0
    %391 = vmatprep.subr.mxu0 0.0
    %392 = vmatpush1.msra.mxu0 0.0
    %393 = vmatprep.subr.mxu0 0.0
    %394 = vmatpush1.msra.mxu0 0.0
    %395 = vmatprep.mubr.f32.mxu0 0.0
    %396 = vmatmul.mubr.f32.gmra.mrb[0].mxu0 %v329
    %v397 = vpop.f32.mrb[0].mxu0
    %v398 = vadd.f32 0.0, %v397
    %v399 = vpop.f32.mrb[0].mxu0
    %400 = vdwg.mxu0
    %v402 = vrot.slane %v398, 6
    %v404 = vadd.f32 %v126, %v402
    %v405 = vxor.u32 %v404, 2147483648
    %v406 = vmul.f32 %v405, 1.442695
    %v407 = vpow.pop %v406
    %v408 = vadd.f32 %v407, 1.0
    %v409 = vrcp.pop %v408
    %v410 = vmul.f32 1.0, %v409
    %v411 = vtanh.pop %v404
    %v413 = vrot.slane %v411, 2
    %415 = vrot.lane.b32.xlu0 %v413, 64
    %v416 = vpop.permute.xlu0 %415
    %v418 = vrot.slane %v416, 6
    %v420 = vmul.f32 %v410, %v418
    %v422 = vrot.slane %v224, 6
    %v424 = vmul.f32 %v410, %v422
    %426 = vrot.lane.b32.xlu0 %v420, 32
    %v427 = vpop.permute.xlu0 %426
    %v429 = vadd.f32 %v424, %v427
    %v430 = vtanh.pop %v429
    %v432 = vrot.slane %v430, 2
    %434 = vrot.lane.b32.xlu0 %v432, 64
    %v435 = vpop.permute.xlu0 %434
    %v437 = vrot.slane %v435, 6
    %v439 = vmul.f32 %v410, %v437
    %v441 = vrot.slane %v327, 6
    %442 = vrot.lane.b32.xlu0 %v441, 32
    %v443 = vpop.permute.xlu0 %442
    %v445 = vsel %vm134, %v439, %v443
    %v447 = vrot.slane %v445, 2
    %v448 = vsel %vm234, %v447, 0
    %450 = vmatprep.subr.mxu0 0.0
    %451 = vmatpush1.msra.mxu0 %v32
    %452 = vmatprep.subr.mxu0 0.0
    %453 = vmatpush1.msra.mxu0 %v33
    %454 = vmatprep.subr.mxu0 0.0
    %455 = vmatpush1.msra.mxu0 %v34
    %456 = vmatprep.subr.mxu0 0.0
    %457 = vmatpush1.msra.mxu0 %v35
    %458 = vmatprep.subr.mxu0 0.0
    %459 = vmatpush1.msra.mxu0 %v36
    %460 = vmatprep.subr.mxu0 0.0
    %461 = vmatpush1.msra.mxu0 %v37
    %462 = vmatprep.subr.mxu0 0.0
    %463 = vmatpush1.msra.mxu0 %v38
    %464 = vmatprep.subr.mxu0 0.0
    %465 = vmatpush1.msra.mxu0 %v39
    %466 = vmatprep.subr.mxu0 0.0
    %467 = vmatpush1.msra.mxu0 0.0
    %468 = vmatprep.subr.mxu0 0.0
    %469 = vmatpush1.msra.mxu0 0.0
    %470 = vmatprep.subr.mxu0 0.0
    %471 = vmatpush1.msra.mxu0 0.0
    %472 = vmatprep.subr.mxu0 0.0
    %473 = vmatpush1.msra.mxu0 0.0
    %474 = vmatprep.subr.mxu0 0.0
    %475 = vmatpush1.msra.mxu0 0.0
    %476 = vmatprep.subr.mxu0 0.0
    %477 = vmatpush1.msra.mxu0 0.0
    %478 = vmatprep.subr.mxu0 0.0
    %479 = vmatpush1.msra.mxu0 0.0
    %480 = vmatprep.subr.mxu0 0.0
    %481 = vmatpush1.msra.mxu0 0.0
    %482 = vmatprep.subr.mxu0 0.0
    %483 = vmatpush1.msra.mxu0 0.0
    %484 = vmatprep.subr.mxu0 0.0
    %485 = vmatpush1.msra.mxu0 0.0
    %486 = vmatprep.subr.mxu0 0.0
    %487 = vmatpush1.msra.mxu0 0.0
    %488 = vmatprep.subr.mxu0 0.0
    %489 = vmatpush1.msra.mxu0 0.0
    %490 = vmatprep.subr.mxu0 0.0
    %491 = vmatpush1.msra.mxu0 0.0
    %492 = vmatprep.subr.mxu0 0.0
    %493 = vmatpush1.msra.mxu0 0.0
    %494 = vmatprep.subr.mxu0 0.0
    %495 = vmatpush1.msra.mxu0 0.0
    %496 = vmatprep.subr.mxu0 0.0
    %497 = vmatpush1.msra.mxu0 0.0
    %498 = vmatprep.subr.mxu0 0.0
    %499 = vmatpush1.msra.mxu0 0.0
    %500 = vmatprep.subr.mxu0 0.0
    %501 = vmatpush1.msra.mxu0 0.0
    %502 = vmatprep.subr.mxu0 0.0
    %503 = vmatpush1.msra.mxu0 0.0
    %504 = vmatprep.subr.mxu0 0.0
    %505 = vmatpush1.msra.mxu0 0.0
    %506 = vmatprep.subr.mxu0 0.0
    %507 = vmatpush1.msra.mxu0 0.0
    %508 = vmatprep.subr.mxu0 0.0
    %509 = vmatpush1.msra.mxu0 0.0
    %510 = vmatprep.subr.mxu0 0.0
    %511 = vmatpush1.msra.mxu0 0.0
    %512 = vmatprep.subr.mxu0 0.0
    %513 = vmatpush1.msra.mxu0 0.0
    %514 = vmatprep.mubr.f32.mxu0 0.0
    %515 = vmatmul.mubr.f32.gmra.mrb[0].mxu0 %v448
    %v516 = vpop.f32.mrb[0].mxu0
    %v517 = vadd.f32 %v233, %v516
    %v518 = vpop.f32.mrb[0].mxu0
    %519 = vdwg.mxu0
    %v520 = vxor.u32 %v517, 2147483648
    %v521 = vmul.f32 %v520, 1.442695
    %v522 = vpow.pop %v521
    %v523 = vadd.f32 %v522, 1.0
    %v524 = vrcp.pop %v523
    %v525 = vmul.f32 1.0, %v524
    %v526 = vtanh.pop %v517
    %527 = vrot.lane.b32.xlu0 %v526, 64
    %v528 = vpop.permute.xlu0 %527
    %v529 = vmul.f32 %v525, %v528
    %v530 = vmul.f32 %v525, %v323
    %532 = vrot.lane.b32.xlu0 %v529, 32
    %v533 = vpop.permute.xlu0 %532
    %v535 = vadd.f32 %v530, %v533
    %v536 = vtanh.pop %v535
    %537 = vrot.lane.b32.xlu0 %v536, 64
    %v538 = vpop.permute.xlu0 %537
    %v539 = vmul.f32 %v525, %v538
    %v541 = vrot.slane %v439, 2
    %v542 = vsel %vm134, %v541, 0
    %544 = vmatprep.subr.mxu0 0.0
    %545 = vmatpush1.msra.mxu0 %v28
    %546 = vmatprep.subr.mxu0 0.0
    %547 = vmatpush1.msra.mxu0 %v29
    %548 = vmatprep.subr.mxu0 0.0
    %549 = vmatpush1.msra.mxu0 %v30
    %550 = vmatprep.subr.mxu0 0.0
    %551 = vmatpush1.msra.mxu0 %v31
    %552 = vmatprep.subr.mxu0 0.0
    %553 = vmatpush1.msra.mxu0 0.0
    %554 = vmatprep.subr.mxu0 0.0
    %555 = vmatpush1.msra.mxu0 0.0
    %556 = vmatprep.subr.mxu0 0.0
    %557 = vmatpush1.msra.mxu0 0.0
    %558 = vmatprep.subr.mxu0 0.0
    %559 = vmatpush1.msra.mxu0 0.0
    %560 = vmatprep.subr.mxu0 0.0
    %561 = vmatpush1.msra.mxu0 0.0
    %562 = vmatprep.subr.mxu0 0.0
    %563 = vmatpush1.msra.mxu0 0.0
    %564 = vmatprep.subr.mxu0 0.0
    %565 = vmatpush1.msra.mxu0 0.0
    %566 = vmatprep.subr.mxu0 0.0
    %567 = vmatpush1.msra.mxu0 0.0
    %568 = vmatprep.subr.mxu0 0.0
    %569 = vmatpush1.msra.mxu0 0.0
    %570 = vmatprep.subr.mxu0 0.0
    %571 = vmatpush1.msra.mxu0 0.0
    %572 = vmatprep.subr.mxu0 0.0
    %573 = vmatpush1.msra.mxu0 0.0
    %574 = vmatprep.subr.mxu0 0.0
    %575 = vmatpush1.msra.mxu0 0.0
    %576 = vmatprep.subr.mxu0 0.0
    %577 = vmatpush1.msra.mxu0 0.0
    %578 = vmatprep.subr.mxu0 0.0
    %579 = vmatpush1.msra.mxu0 0.0
    %580 = vmatprep.subr.mxu0 0.0
    %581 = vmatpush1.msra.mxu0 0.0
    %582 = vmatprep.subr.mxu0 0.0
    %583 = vmatpush1.msra.mxu0 0.0
    %584 = vmatprep.subr.mxu0 0.0
    %585 = vmatpush1.msra.mxu0 0.0
    %586 = vmatprep.subr.mxu0 0.0
    %587 = vmatpush1.msra.mxu0 0.0
    %588 = vmatprep.subr.mxu0 0.0
    %589 = vmatpush1.msra.mxu0 0.0
    %590 = vmatprep.subr.mxu0 0.0
    %591 = vmatpush1.msra.mxu0 0.0
    %592 = vmatprep.subr.mxu0 0.0
    %593 = vmatpush1.msra.mxu0 0.0
    %594 = vmatprep.subr.mxu0 0.0
    %595 = vmatpush1.msra.mxu0 0.0
    %596 = vmatprep.subr.mxu0 0.0
    %597 = vmatpush1.msra.mxu0 0.0
    %598 = vmatprep.subr.mxu0 0.0
    %599 = vmatpush1.msra.mxu0 0.0
    %600 = vmatprep.subr.mxu0 0.0
    %601 = vmatpush1.msra.mxu0 0.0
    %602 = vmatprep.subr.mxu0 0.0
    %603 = vmatpush1.msra.mxu0 0.0
    %604 = vmatprep.subr.mxu0 0.0
    %605 = vmatpush1.msra.mxu0 0.0
    %606 = vmatprep.subr.mxu0 0.0
    %607 = vmatpush1.msra.mxu0 0.0
    %608 = vmatprep.mubr.f32.mxu0 0.0
    %609 = vmatmul.mubr.f32.gmra.mrb[0].mxu0 %v542
    %v610 = vpop.f32.mrb[0].mxu0
    %v611 = vadd.f32 0.0, %v610
    %v612 = vpop.f32.mrb[0].mxu0
    %613 = vdwg.mxu0
    %v615 = vrot.slane %v611, 4
    %v617 = vadd.f32 %v126, %v615
    %v618 = vxor.u32 %v617, 2147483648
    %v619 = vmul.f32 %v618, 1.442695
    %v620 = vpow.pop %v619
    %v621 = vadd.f32 %v620, 1.0
    %v622 = vrcp.pop %v621
    %v623 = vmul.f32 1.0, %v622
    %v624 = vtanh.pop %v617
    %v626 = vrot.slane %v624, 4
    %628 = vrot.lane.b32.xlu0 %v626, 64
    %v629 = vpop.permute.xlu0 %628
    %v631 = vrot.slane %v629, 4
    %v633 = vmul.f32 %v623, %v631
    %v635 = vrot.slane %v429, 6
    %v637 = vmul.f32 %v623, %v635
    %639 = vrot.lane.b32.xlu0 %v633, 32
    %v640 = vpop.permute.xlu0 %639
    %v642 = vadd.f32 %v637, %v640
    %v643 = vtanh.pop %v642
    %v645 = vrot.slane %v643, 4
    %647 = vrot.lane.b32.xlu0 %v645, 64
    %v648 = vpop.permute.xlu0 %647
    %v650 = vrot.slane %v648, 4
    %v652 = vmul.f32 %v623, %v650
    %v654 = vrot.slane %v539, 4
    %655 = vrot.lane.b32.xlu0 %v654, 32
    %v656 = vpop.permute.xlu0 %655
    %v658 = vsel %vm134, %v652, %v656
    %v660 = vrot.slane %v658, 4
    %v661 = vsel %vm234, %v660, 0
    %663 = vmatprep.subr.mxu0 0.0
    %664 = vmatpush1.msra.mxu0 %v32
    %665 = vmatprep.subr.mxu0 0.0
    %666 = vmatpush1.msra.mxu0 %v33
    %667 = vmatprep.subr.mxu0 0.0
    %668 = vmatpush1.msra.mxu0 %v34
    %669 = vmatprep.subr.mxu0 0.0
    %670 = vmatpush1.msra.mxu0 %v35
    %671 = vmatprep.subr.mxu0 0.0
    %672 = vmatpush1.msra.mxu0 %v36
    %673 = vmatprep.subr.mxu0 0.0
    %674 = vmatpush1.msra.mxu0 %v37
    %675 = vmatprep.subr.mxu0 0.0
    %676 = vmatpush1.msra.mxu0 %v38
    %677 = vmatprep.subr.mxu0 0.0
    %678 = vmatpush1.msra.mxu0 %v39
    %679 = vmatprep.subr.mxu0 0.0
    %680 = vmatpush1.msra.mxu0 0.0
    %681 = vmatprep.subr.mxu0 0.0
    %682 = vmatpush1.msra.mxu0 0.0
    %683 = vmatprep.subr.mxu0 0.0
    %684 = vmatpush1.msra.mxu0 0.0
    %685 = vmatprep.subr.mxu0 0.0
    %686 = vmatpush1.msra.mxu0 0.0
    %687 = vmatprep.subr.mxu0 0.0
    %688 = vmatpush1.msra.mxu0 0.0
    %689 = vmatprep.subr.mxu0 0.0
    %690 = vmatpush1.msra.mxu0 0.0
    %691 = vmatprep.subr.mxu0 0.0
    %692 = vmatpush1.msra.mxu0 0.0
    %693 = vmatprep.subr.mxu0 0.0
    %694 = vmatpush1.msra.mxu0 0.0
    %695 = vmatprep.subr.mxu0 0.0
    %696 = vmatpush1.msra.mxu0 0.0
    %697 = vmatprep.subr.mxu0 0.0
    %698 = vmatpush1.msra.mxu0 0.0
    %699 = vmatprep.subr.mxu0 0.0
    %700 = vmatpush1.msra.mxu0 0.0
    %701 = vmatprep.subr.mxu0 0.0
    %702 = vmatpush1.msra.mxu0 0.0
    %703 = vmatprep.subr.mxu0 0.0
    %704 = vmatpush1.msra.mxu0 0.0
    %705 = vmatprep.subr.mxu0 0.0
    %706 = vmatpush1.msra.mxu0 0.0
    %707 = vmatprep.subr.mxu0 0.0
    %708 = vmatpush1.msra.mxu0 0.0
    %709 = vmatprep.subr.mxu0 0.0
    %710 = vmatpush1.msra.mxu0 0.0
    %711 = vmatprep.subr.mxu0 0.0
    %712 = vmatpush1.msra.mxu0 0.0
    %713 = vmatprep.subr.mxu0 0.0
    %714 = vmatpush1.msra.mxu0 0.0
    %715 = vmatprep.subr.mxu0 0.0
    %716 = vmatpush1.msra.mxu0 0.0
    %717 = vmatprep.subr.mxu0 0.0
    %718 = vmatpush1.msra.mxu0 0.0
    %719 = vmatprep.subr.mxu0 0.0
    %720 = vmatpush1.msra.mxu0 0.0
    %721 = vmatprep.subr.mxu0 0.0
    %722 = vmatpush1.msra.mxu0 0.0
    %723 = vmatprep.subr.mxu0 0.0
    %724 = vmatpush1.msra.mxu0 0.0
    %725 = vmatprep.subr.mxu0 0.0
    %726 = vmatpush1.msra.mxu0 0.0
    %727 = vmatprep.mubr.f32.mxu0 0.0
    %728 = vmatmul.mubr.f32.gmra.mrb[0].mxu0 %v661
    %v729 = vpop.f32.mrb[0].mxu0
    %v730 = vadd.f32 %v233, %v729
    %v731 = vpop.f32.mrb[0].mxu0
    %732 = vdwg.mxu0
    %v733 = vxor.u32 %v730, 2147483648
    %v734 = vmul.f32 %v733, 1.442695
    %v735 = vpow.pop %v734
    %v736 = vadd.f32 %v735, 1.0
    %v737 = vrcp.pop %v736
    %v738 = vmul.f32 1.0, %v737
    %v739 = vtanh.pop %v730
    %740 = vrot.lane.b32.xlu0 %v739, 64
    %v741 = vpop.permute.xlu0 %740
    %v742 = vmul.f32 %v738, %v741
    %v743 = vmul.f32 %v738, %v535
    %745 = vrot.lane.b32.xlu0 %v742, 32
    %v746 = vpop.permute.xlu0 %745
    %v748 = vadd.f32 %v743, %v746
    %v749 = vtanh.pop %v748
    %750 = vrot.lane.b32.xlu0 %v749, 64
    %v751 = vpop.permute.xlu0 %750
    %v752 = vmul.f32 %v738, %v751
    %v754 = vrot.slane %v652, 4
    %v755 = vsel %vm134, %v754, 0
    %757 = vmatprep.subr.mxu0 0.0
    %758 = vmatpush1.msra.mxu0 %v28
    %759 = vmatprep.subr.mxu0 0.0
    %760 = vmatpush1.msra.mxu0 %v29
    %761 = vmatprep.subr.mxu0 0.0
    %762 = vmatpush1.msra.mxu0 %v30
    %763 = vmatprep.subr.mxu0 0.0
    %764 = vmatpush1.msra.mxu0 %v31
    %765 = vmatprep.subr.mxu0 0.0
    %766 = vmatpush1.msra.mxu0 0.0
    %767 = vmatprep.subr.mxu0 0.0
    %768 = vmatpush1.msra.mxu0 0.0
    %769 = vmatprep.subr.mxu0 0.0
    %770 = vmatpush1.msra.mxu0 0.0
    %771 = vmatprep.subr.mxu0 0.0
    %772 = vmatpush1.msra.mxu0 0.0
    %773 = vmatprep.subr.mxu0 0.0
    %774 = vmatpush1.msra.mxu0 0.0
    %775 = vmatprep.subr.mxu0 0.0
    %776 = vmatpush1.msra.mxu0 0.0
    %777 = vmatprep.subr.mxu0 0.0
    %778 = vmatpush1.msra.mxu0 0.0
    %779 = vmatprep.subr.mxu0 0.0
    %780 = vmatpush1.msra.mxu0 0.0
    %781 = vmatprep.subr.mxu0 0.0
    %782 = vmatpush1.msra.mxu0 0.0
    %783 = vmatprep.subr.mxu0 0.0
    %784 = vmatpush1.msra.mxu0 0.0
    %785 = vmatprep.subr.mxu0 0.0
    %786 = vmatpush1.msra.mxu0 0.0
    %787 = vmatprep.subr.mxu0 0.0
    %788 = vmatpush1.msra.mxu0 0.0
    %789 = vmatprep.subr.mxu0 0.0
    %790 = vmatpush1.msra.mxu0 0.0
    %791 = vmatprep.subr.mxu0 0.0
    %792 = vmatpush1.msra.mxu0 0.0
    %793 = vmatprep.subr.mxu0 0.0
    %794 = vmatpush1.msra.mxu0 0.0
    %795 = vmatprep.subr.mxu0 0.0
    %796 = vmatpush1.msra.mxu0 0.0
    %797 = vmatprep.subr.mxu0 0.0
    %798 = vmatpush1.msra.mxu0 0.0
    %799 = vmatprep.subr.mxu0 0.0
    %800 = vmatpush1.msra.mxu0 0.0
    %801 = vmatprep.subr.mxu0 0.0
    %802 = vmatpush1.msra.mxu0 0.0
    %803 = vmatprep.subr.mxu0 0.0
    %804 = vmatpush1.msra.mxu0 0.0
    %805 = vmatprep.subr.mxu0 0.0
    %806 = vmatpush1.msra.mxu0 0.0
    %807 = vmatprep.subr.mxu0 0.0
    %808 = vmatpush1.msra.mxu0 0.0
    %809 = vmatprep.subr.mxu0 0.0
    %810 = vmatpush1.msra.mxu0 0.0
    %811 = vmatprep.subr.mxu0 0.0
    %812 = vmatpush1.msra.mxu0 0.0
    %813 = vmatprep.subr.mxu0 0.0
    %814 = vmatpush1.msra.mxu0 0.0
    %815 = vmatprep.subr.mxu0 0.0
    %816 = vmatpush1.msra.mxu0 0.0
    %817 = vmatprep.subr.mxu0 0.0
    %818 = vmatpush1.msra.mxu0 0.0
    %819 = vmatprep.subr.mxu0 0.0
    %820 = vmatpush1.msra.mxu0 0.0
    %821 = vmatprep.mubr.f32.mxu0 0.0
    %822 = vmatmul.mubr.f32.gmra.mrb[0].mxu0 %v755
    %v823 = vpop.f32.mrb[0].mxu0
    %v824 = vadd.f32 0.0, %v823
    %v825 = vpop.f32.mrb[0].mxu0
    %826 = vdwg.mxu0
    %v828 = vrot.slane %v824, 2
    %v830 = vadd.f32 %v126, %v828
    %v831 = vxor.u32 %v830, 2147483648
    %v832 = vmul.f32 %v831, 1.442695
    %v833 = vpow.pop %v832
    %v834 = vadd.f32 %v833, 1.0
    %v835 = vrcp.pop %v834
    %v836 = vmul.f32 1.0, %v835
    %v837 = vtanh.pop %v830
    %v839 = vrot.slane %v837, 6
    %841 = vrot.lane.b32.xlu0 %v839, 64
    %v842 = vpop.permute.xlu0 %841
    %v844 = vrot.slane %v842, 2
    %v846 = vmul.f32 %v836, %v844
    %v848 = vrot.slane %v642, 6
    %v850 = vmul.f32 %v836, %v848
    %852 = vrot.lane.b32.xlu0 %v846, 32
    %v853 = vpop.permute.xlu0 %852
    %v855 = vadd.f32 %v850, %v853
    %v856 = vtanh.pop %v855
    %v858 = vrot.slane %v856, 6
    %860 = vrot.lane.b32.xlu0 %v858, 64
    %v861 = vpop.permute.xlu0 %860
    %v863 = vrot.slane %v861, 2
    %v865 = vmul.f32 %v836, %v863
    %v867 = vrot.slane %v752, 2
    %868 = vrot.lane.b32.xlu0 %v867, 32
    %v869 = vpop.permute.xlu0 %868
    %v871 = vsel %vm134, %v865, %v869
    %v873 = vrot.slane %v871, 6
    %v874 = vsel %vm234, %v873, 0
    %876 = vmatprep.subr.mxu0 0.0
    %877 = vmatpush1.msra.mxu0 %v32
    %878 = vmatprep.subr.mxu0 0.0
    %879 = vmatpush1.msra.mxu0 %v33
    %880 = vmatprep.subr.mxu0 0.0
    %881 = vmatpush1.msra.mxu0 %v34
    %882 = vmatprep.subr.mxu0 0.0
    %883 = vmatpush1.msra.mxu0 %v35
    %884 = vmatprep.subr.mxu0 0.0
    %885 = vmatpush1.msra.mxu0 %v36
    %886 = vmatprep.subr.mxu0 0.0
    %887 = vmatpush1.msra.mxu0 %v37
    %888 = vmatprep.subr.mxu0 0.0
    %889 = vmatpush1.msra.mxu0 %v38
    %890 = vmatprep.subr.mxu0 0.0
    %891 = vmatpush1.msra.mxu0 %v39
    %892 = vmatprep.subr.mxu0 0.0
    %893 = vmatpush1.msra.mxu0 0.0
    %894 = vmatprep.subr.mxu0 0.0
    %895 = vmatpush1.msra.mxu0 0.0
    %896 = vmatprep.subr.mxu0 0.0
    %897 = vmatpush1.msra.mxu0 0.0
    %898 = vmatprep.subr.mxu0 0.0
    %899 = vmatpush1.msra.mxu0 0.0
    %900 = vmatprep.subr.mxu0 0.0
    %901 = vmatpush1.msra.mxu0 0.0
    %902 = vmatprep.subr.mxu0 0.0
    %903 = vmatpush1.msra.mxu0 0.0
    %904 = vmatprep.subr.mxu0 0.0
    %905 = vmatpush1.msra.mxu0 0.0
    %906 = vmatprep.subr.mxu0 0.0
    %907 = vmatpush1.msra.mxu0 0.0
    %908 = vmatprep.subr.mxu0 0.0
    %909 = vmatpush1.msra.mxu0 0.0
    %910 = vmatprep.subr.mxu0 0.0
    %911 = vmatpush1.msra.mxu0 0.0
    %912 = vmatprep.subr.mxu0 0.0
    %913 = vmatpush1.msra.mxu0 0.0
    %914 = vmatprep.subr.mxu0 0.0
    %915 = vmatpush1.msra.mxu0 0.0
    %916 = vmatprep.subr.mxu0 0.0
    %917 = vmatpush1.msra.mxu0 0.0
    %918 = vmatprep.subr.mxu0 0.0
    %919 = vmatpush1.msra.mxu0 0.0
    %920 = vmatprep.subr.mxu0 0.0
    %921 = vmatpush1.msra.mxu0 0.0
    %922 = vmatprep.subr.mxu0 0.0
    %923 = vmatpush1.msra.mxu0 0.0
    %924 = vmatprep.subr.mxu0 0.0
    %925 = vmatpush1.msra.mxu0 0.0
    %926 = vmatprep.subr.mxu0 0.0
    %927 = vmatpush1.msra.mxu0 0.0
    %928 = vmatprep.subr.mxu0 0.0
    %929 = vmatpush1.msra.mxu0 0.0
    %930 = vmatprep.subr.mxu0 0.0
    %931 = vmatpush1.msra.mxu0 0.0
    %932 = vmatprep.subr.mxu0 0.0
    %933 = vmatpush1.msra.mxu0 0.0
    %934 = vmatprep.subr.mxu0 0.0
    %935 = vmatpush1.msra.mxu0 0.0
    %936 = vmatprep.subr.mxu0 0.0
    %937 = vmatpush1.msra.mxu0 0.0
    %938 = vmatprep.subr.mxu0 0.0
    %939 = vmatpush1.msra.mxu0 0.0
    %940 = vmatprep.mubr.f32.mxu0 0.0
    %941 = vmatmul.mubr.f32.gmra.mrb[0].mxu0 %v874
    %v942 = vpop.f32.mrb[0].mxu0
    %v943 = vadd.f32 %v233, %v942
    %v944 = vpop.f32.mrb[0].mxu0
    %945 = vdwg.mxu0
    %v946 = vxor.u32 %v943, 2147483648
    %v947 = vmul.f32 %v946, 1.442695
    %v948 = vpow.pop %v947
    %v949 = vadd.f32 %v948, 1.0
    %v950 = vrcp.pop %v949
    %v951 = vmul.f32 1.0, %v950
    %v952 = vtanh.pop %v943
    %953 = vrot.lane.b32.xlu0 %v952, 64
    %v954 = vpop.permute.xlu0 %953
    %v955 = vmul.f32 %v951, %v954
    %v956 = vmul.f32 %v951, %v748
    %958 = vrot.lane.b32.xlu0 %v955, 32
    %v959 = vpop.permute.xlu0 %958
    %v961 = vadd.f32 %v956, %v959
    %v962 = vtanh.pop %v961
    %963 = vrot.lane.b32.xlu0 %v962, 64
    %v964 = vpop.permute.xlu0 %963
    %v965 = vmul.f32 %v951, %v964
    %v967 = vrot.slane %v865, 6
    %v968 = vsel %vm134, %v967, 0
    %970 = vmatprep.subr.mxu0 0.0
    %971 = vmatpush1.msra.mxu0 %v28
    %972 = vmatprep.subr.mxu0 0.0
    %973 = vmatpush1.msra.mxu0 %v29
    %974 = vmatprep.subr.mxu0 0.0
    %975 = vmatpush1.msra.mxu0 %v30
    %976 = vmatprep.subr.mxu0 0.0
    %977 = vmatpush1.msra.mxu0 %v31
    %978 = vmatprep.subr.mxu0 0.0
    %979 = vmatpush1.msra.mxu0 0.0
    %980 = vmatprep.subr.mxu0 0.0
    %981 = vmatpush1.msra.mxu0 0.0
    %982 = vmatprep.subr.mxu0 0.0
    %983 = vmatpush1.msra.mxu0 0.0
    %984 = vmatprep.subr.mxu0 0.0
    %985 = vmatpush1.msra.mxu0 0.0
    %986 = vmatprep.subr.mxu0 0.0
    %987 = vmatpush1.msra.mxu0 0.0
    %988 = vmatprep.subr.mxu0 0.0
    %989 = vmatpush1.msra.mxu0 0.0
    %990 = vmatprep.subr.mxu0 0.0
    %991 = vmatpush1.msra.mxu0 0.0
    %992 = vmatprep.subr.mxu0 0.0
    %993 = vmatpush1.msra.mxu0 0.0
    %994 = vmatprep.subr.mxu0 0.0
    %995 = vmatpush1.msra.mxu0 0.0
    %996 = vmatprep.subr.mxu0 0.0
    %997 = vmatpush1.msra.mxu0 0.0
    %998 = vmatprep.subr.mxu0 0.0
    %999 = vmatpush1.msra.mxu0 0.0
    %1000 = vmatprep.subr.mxu0 0.0
    %1001 = vmatpush1.msra.mxu0 0.0
    %1002 = vmatprep.subr.mxu0 0.0
    %1003 = vmatpush1.msra.mxu0 0.0
    %1004 = vmatprep.subr.mxu0 0.0
    %1005 = vmatpush1.msra.mxu0 0.0
    %1006 = vmatprep.subr.mxu0 0.0
    %1007 = vmatpush1.msra.mxu0 0.0
    %1008 = vmatprep.subr.mxu0 0.0
    %1009 = vmatpush1.msra.mxu0 0.0
    %1010 = vmatprep.subr.mxu0 0.0
    %1011 = vmatpush1.msra.mxu0 0.0
    %1012 = vmatprep.subr.mxu0 0.0
    %1013 = vmatpush1.msra.mxu0 0.0
    %1014 = vmatprep.subr.mxu0 0.0
    %1015 = vmatpush1.msra.mxu0 0.0
    %1016 = vmatprep.subr.mxu0 0.0
    %1017 = vmatpush1.msra.mxu0 0.0
    %1018 = vmatprep.subr.mxu0 0.0
    %1019 = vmatpush1.msra.mxu0 0.0
    %1020 = vmatprep.subr.mxu0 0.0
    %1021 = vmatpush1.msra.mxu0 0.0
    %1022 = vmatprep.subr.mxu0 0.0
    %1023 = vmatpush1.msra.mxu0 0.0
    %1024 = vmatprep.subr.mxu0 0.0
    %1025 = vmatpush1.msra.mxu0 0.0
    %1026 = vmatprep.subr.mxu0 0.0
    %1027 = vmatpush1.msra.mxu0 0.0
    %1028 = vmatprep.subr.mxu0 0.0
    %1029 = vmatpush1.msra.mxu0 0.0
    %1030 = vmatprep.subr.mxu0 0.0
    %1031 = vmatpush1.msra.mxu0 0.0
    %1032 = vmatprep.subr.mxu0 0.0
    %1033 = vmatpush1.msra.mxu0 0.0
    %1034 = vmatprep.mubr.f32.mxu0 0.0
    %1035 = vmatmul.mubr.f32.gmra.mrb[0].mxu0 %v968
    %v1036 = vpop.f32.mrb[0].mxu0
    %v1037 = vadd.f32 0.0, %v1036
    %v1038 = vpop.f32.mrb[0].mxu0
    %1039 = vdwg.mxu0
    %v1040 = vadd.f32 %v131, %v1037
    %v1041 = vxor.u32 %v1040, 2147483648
    %v1042 = vmul.f32 %v1041, 1.442695
    %v1043 = vpow.pop %v1042
    %v1044 = vadd.f32 %v1043, 1.0
    %v1045 = vrcp.pop %v1044
    %v1046 = vmul.f32 1.0, %v1045
    %v1047 = vtanh.pop %v1040
    %1048 = vrot.lane.b32.xlu0 %v1047, 64
    %v1049 = vpop.permute.xlu0 %1048
    %v1050 = vmul.f32 %v1046, %v1049
    %v1052 = vrot.slane %v855, 6
    %v1054 = vmul.f32 %v1046, %v1052
    %1056 = vrot.lane.b32.xlu0 %v1050, 32
    %v1057 = vpop.permute.xlu0 %1056
    %v1059 = vadd.f32 %v1054, %v1057
    %v1060 = vtanh.pop %v1059
    %1061 = vrot.lane.b32.xlu0 %v1060, 64
    %v1062 = vpop.permute.xlu0 %1061
    %v1063 = vmul.f32 %v1046, %v1062
    %1065 = vrot.lane.b32.xlu0 %v965, 32
    %v1066 = vpop.permute.xlu0 %1065
    %v1068 = vsel %vm134, %v1063, %v1066
    %v1070 = vsel %vm234, %v1068, 0
    %1072 = vmatprep.subr.mxu0 0.0
    %1073 = vmatpush1.msra.mxu0 %v32
    %1074 = vmatprep.subr.mxu0 0.0
    %1075 = vmatpush1.msra.mxu0 %v33
    %1076 = vmatprep.subr.mxu0 0.0
    %1077 = vmatpush1.msra.mxu0 %v34
    %1078 = vmatprep.subr.mxu0 0.0
    %1079 = vmatpush1.msra.mxu0 %v35
    %1080 = vmatprep.subr.mxu0 0.0
    %1081 = vmatpush1.msra.mxu0 %v36
    %1082 = vmatprep.subr.mxu0 0.0
    %1083 = vmatpush1.msra.mxu0 %v37
    %1084 = vmatprep.subr.mxu0 0.0
    %1085 = vmatpush1.msra.mxu0 %v38
    %1086 = vmatprep.subr.mxu0 0.0
    %1087 = vmatpush1.msra.mxu0 %v39
    %1088 = vmatprep.subr.mxu0 0.0
    %1089 = vmatpush1.msra.mxu0 0.0
    %1090 = vmatprep.subr.mxu0 0.0
    %1091 = vmatpush1.msra.mxu0 0.0
    %1092 = vmatprep.subr.mxu0 0.0
    %1093 = vmatpush1.msra.mxu0 0.0
    %1094 = vmatprep.subr.mxu0 0.0
    %1095 = vmatpush1.msra.mxu0 0.0
    %1096 = vmatprep.subr.mxu0 0.0
    %1097 = vmatpush1.msra.mxu0 0.0
    %1098 = vmatprep.subr.mxu0 0.0
    %1099 = vmatpush1.msra.mxu0 0.0
    %1100 = vmatprep.subr.mxu0 0.0
    %1101 = vmatpush1.msra.mxu0 0.0
    %1102 = vmatprep.subr.mxu0 0.0
    %1103 = vmatpush1.msra.mxu0 0.0
    %1104 = vmatprep.subr.mxu0 0.0
    %1105 = vmatpush1.msra.mxu0 0.0
    %1106 = vmatprep.subr.mxu0 0.0
    %1107 = vmatpush1.msra.mxu0 0.0
    %1108 = vmatprep.subr.mxu0 0.0
    %1109 = vmatpush1.msra.mxu0 0.0
    %1110 = vmatprep.subr.mxu0 0.0
    %1111 = vmatpush1.msra.mxu0 0.0
    %1112 = vmatprep.subr.mxu0 0.0
    %1113 = vmatpush1.msra.mxu0 0.0
    %1114 = vmatprep.subr.mxu0 0.0
    %1115 = vmatpush1.msra.mxu0 0.0
    %1116 = vmatprep.subr.mxu0 0.0
    %1117 = vmatpush1.msra.mxu0 0.0
    %1118 = vmatprep.subr.mxu0 0.0
    %1119 = vmatpush1.msra.mxu0 0.0
    %1120 = vmatprep.subr.mxu0 0.0
    %1121 = vmatpush1.msra.mxu0 0.0
    %1122 = vmatprep.subr.mxu0 0.0
    %1123 = vmatpush1.msra.mxu0 0.0
    %1124 = vmatprep.subr.mxu0 0.0
    %1125 = vmatpush1.msra.mxu0 0.0
    %1126 = vmatprep.subr.mxu0 0.0
    %1127 = vmatpush1.msra.mxu0 0.0
    %1128 = vmatprep.subr.mxu0 0.0
    %1129 = vmatpush1.msra.mxu0 0.0
    %1130 = vmatprep.subr.mxu0 0.0
    %1131 = vmatpush1.msra.mxu0 0.0
    %1132 = vmatprep.subr.mxu0 0.0
    %1133 = vmatpush1.msra.mxu0 0.0
    %1134 = vmatprep.subr.mxu0 0.0
    %1135 = vmatpush1.msra.mxu0 0.0
    %1136 = vmatprep.mubr.f32.mxu0 0.0
    %1137 = vmatmul.mubr.f32.gmra.mrb[0].mxu0 %v1070
    %v1138 = vpop.f32.mrb[0].mxu0
    %v1139 = vadd.f32 %v233, %v1138
    %v1140 = vpop.f32.mrb[0].mxu0
    %1141 = vdwg.mxu0
    %v1142 = vxor.u32 %v1139, 2147483648
    %v1143 = vmul.f32 %v1142, 1.442695
    %v1144 = vpow.pop %v1143
    %v1145 = vadd.f32 %v1144, 1.0
    %v1146 = vrcp.pop %v1145
    %v1147 = vmul.f32 1.0, %v1146
    %v1148 = vtanh.pop %v1139
    %1149 = vrot.lane.b32.xlu0 %v1148, 64
    %v1150 = vpop.permute.xlu0 %1149
    %v1151 = vmul.f32 %v1147, %v1150
    %v1152 = vmul.f32 %v1147, %v961
    %1154 = vrot.lane.b32.xlu0 %v1151, 32
    %v1155 = vpop.permute.xlu0 %1154
    %v1157 = vadd.f32 %v1152, %v1155
    %v1158 = vtanh.pop %v1157
    %1159 = vrot.lane.b32.xlu0 %v1158, 64
    %v1160 = vpop.permute.xlu0 %1159
    %v1161 = vmul.f32 %v1147, %v1160
    %v1163 = vsel %vm134, %v1063, 0
    %1165 = vmatprep.subr.mxu0 0.0
    %1166 = vmatpush1.msra.mxu0 %v28
    %1167 = vmatprep.subr.mxu0 0.0
    %1168 = vmatpush1.msra.mxu0 %v29
    %1169 = vmatprep.subr.mxu0 0.0
    %1170 = vmatpush1.msra.mxu0 %v30
    %1171 = vmatprep.subr.mxu0 0.0
    %1172 = vmatpush1.msra.mxu0 %v31
    %1173 = vmatprep.subr.mxu0 0.0
    %1174 = vmatpush1.msra.mxu0 0.0
    %1175 = vmatprep.subr.mxu0 0.0
    %1176 = vmatpush1.msra.mxu0 0.0
    %1177 = vmatprep.subr.mxu0 0.0
    %1178 = vmatpush1.msra.mxu0 0.0
    %1179 = vmatprep.subr.mxu0 0.0
    %1180 = vmatpush1.msra.mxu0 0.0
    %1181 = vmatprep.subr.mxu0 0.0
    %1182 = vmatpush1.msra.mxu0 0.0
    %1183 = vmatprep.subr.mxu0 0.0
    %1184 = vmatpush1.msra.mxu0 0.0
    %1185 = vmatprep.subr.mxu0 0.0
    %1186 = vmatpush1.msra.mxu0 0.0
    %1187 = vmatprep.subr.mxu0 0.0
    %1188 = vmatpush1.msra.mxu0 0.0
    %1189 = vmatprep.subr.mxu0 0.0
    %1190 = vmatpush1.msra.mxu0 0.0
    %1191 = vmatprep.subr.mxu0 0.0
    %1192 = vmatpush1.msra.mxu0 0.0
    %1193 = vmatprep.subr.mxu0 0.0
    %1194 = vmatpush1.msra.mxu0 0.0
    %1195 = vmatprep.subr.mxu0 0.0
    %1196 = vmatpush1.msra.mxu0 0.0
    %1197 = vmatprep.subr.mxu0 0.0
    %1198 = vmatpush1.msra.mxu0 0.0
    %1199 = vmatprep.subr.mxu0 0.0
    %1200 = vmatpush1.msra.mxu0 0.0
    %1201 = vmatprep.subr.mxu0 0.0
    %1202 = vmatpush1.msra.mxu0 0.0
    %1203 = vmatprep.subr.mxu0 0.0
    %1204 = vmatpush1.msra.mxu0 0.0
    %1205 = vmatprep.subr.mxu0 0.0
    %1206 = vmatpush1.msra.mxu0 0.0
    %1207 = vmatprep.subr.mxu0 0.0
    %1208 = vmatpush1.msra.mxu0 0.0
    %1209 = vmatprep.subr.mxu0 0.0
    %1210 = vmatpush1.msra.mxu0 0.0
    %1211 = vmatprep.subr.mxu0 0.0
    %1212 = vmatpush1.msra.mxu0 0.0
    %1213 = vmatprep.subr.mxu0 0.0
    %1214 = vmatpush1.msra.mxu0 0.0
    %1215 = vmatprep.subr.mxu0 0.0
    %1216 = vmatpush1.msra.mxu0 0.0
    %1217 = vmatprep.subr.mxu0 0.0
    %1218 = vmatpush1.msra.mxu0 0.0
    %1219 = vmatprep.subr.mxu0 0.0
    %1220 = vmatpush1.msra.mxu0 0.0
    %1221 = vmatprep.subr.mxu0 0.0
    %1222 = vmatpush1.msra.mxu0 0.0
    %1223 = vmatprep.subr.mxu0 0.0
    %1224 = vmatpush1.msra.mxu0 0.0
    %1225 = vmatprep.subr.mxu0 0.0
    %1226 = vmatpush1.msra.mxu0 0.0
    %1227 = vmatprep.subr.mxu0 0.0
    %1228 = vmatpush1.msra.mxu0 0.0
    %1229 = vmatprep.mubr.f32.mxu0 0.0
    %1230 = vmatmul.mubr.f32.gmra.mrb[0].mxu0 %v1163
    %v1231 = vpop.f32.mrb[0].mxu0
    %v1232 = vadd.f32 0.0, %v1231
    %v1233 = vpop.f32.mrb[0].mxu0
    %1234 = vdwg.mxu0
    %v1236 = vrot.slane %v1232, 6
    %v1238 = vadd.f32 %v131, %v1236
    %v1239 = vxor.u32 %v1238, 2147483648
    %v1240 = vmul.f32 %v1239, 1.442695
    %v1241 = vpow.pop %v1240
    %v1242 = vadd.f32 %v1241, 1.0
    %v1243 = vrcp.pop %v1242
    %v1244 = vmul.f32 1.0, %v1243
    %v1245 = vtanh.pop %v1238
    %v1247 = vrot.slane %v1245, 2
    %1249 = vrot.lane.b32.xlu0 %v1247, 64
    %v1250 = vpop.permute.xlu0 %1249
    %v1252 = vrot.slane %v1250, 6
    %v1254 = vmul.f32 %v1244, %v1252
    %v1256 = vrot.slane %v1059, 6
    %v1258 = vmul.f32 %v1244, %v1256
    %1260 = vrot.lane.b32.xlu0 %v1254, 32
    %v1261 = vpop.permute.xlu0 %1260
    %v1263 = vadd.f32 %v1258, %v1261
    %v1264 = vtanh.pop %v1263
    %v1266 = vrot.slane %v1264, 2
    %1268 = vrot.lane.b32.xlu0 %v1266, 64
    %v1269 = vpop.permute.xlu0 %1268
    %v1271 = vrot.slane %v1269, 6
    %v1273 = vmul.f32 %v1244, %v1271
    %v1275 = vrot.slane %v1161, 6
    %1276 = vrot.lane.b32.xlu0 %v1275, 32
    %v1277 = vpop.permute.xlu0 %1276
    %v1279 = vsel %vm134, %v1273, %v1277
    %v1281 = vrot.slane %v1279, 2
    %v1282 = vsel %vm234, %v1281, 0
    %1284 = vmatprep.subr.mxu0 0.0
    %1285 = vmatpush1.msra.mxu0 %v32
    %1286 = vmatprep.subr.mxu0 0.0
    %1287 = vmatpush1.msra.mxu0 %v33
    %1288 = vmatprep.subr.mxu0 0.0
    %1289 = vmatpush1.msra.mxu0 %v34
    %1290 = vmatprep.subr.mxu0 0.0
    %1291 = vmatpush1.msra.mxu0 %v35
    %1292 = vmatprep.subr.mxu0 0.0
    %1293 = vmatpush1.msra.mxu0 %v36
    %1294 = vmatprep.subr.mxu0 0.0
    %1295 = vmatpush1.msra.mxu0 %v37
    %1296 = vmatprep.subr.mxu0 0.0
    %1297 = vmatpush1.msra.mxu0 %v38
    %1298 = vmatprep.subr.mxu0 0.0
    %1299 = vmatpush1.msra.mxu0 %v39
    %1300 = vmatprep.subr.mxu0 0.0
    %1301 = vmatpush1.msra.mxu0 0.0
    %1302 = vmatprep.subr.mxu0 0.0
    %1303 = vmatpush1.msra.mxu0 0.0
    %1304 = vmatprep.subr.mxu0 0.0
    %1305 = vmatpush1.msra.mxu0 0.0
    %1306 = vmatprep.subr.mxu0 0.0
    %1307 = vmatpush1.msra.mxu0 0.0
    %1308 = vmatprep.subr.mxu0 0.0
    %1309 = vmatpush1.msra.mxu0 0.0
    %1310 = vmatprep.subr.mxu0 0.0
    %1311 = vmatpush1.msra.mxu0 0.0
    %1312 = vmatprep.subr.mxu0 0.0
    %1313 = vmatpush1.msra.mxu0 0.0
    %1314 = vmatprep.subr.mxu0 0.0
    %1315 = vmatpush1.msra.mxu0 0.0
    %1316 = vmatprep.subr.mxu0 0.0
    %1317 = vmatpush1.msra.mxu0 0.0
    %1318 = vmatprep.subr.mxu0 0.0
    %1319 = vmatpush1.msra.mxu0 0.0
    %1320 = vmatprep.subr.mxu0 0.0
    %1321 = vmatpush1.msra.mxu0 0.0
    %1322 = vmatprep.subr.mxu0 0.0
    %1323 = vmatpush1.msra.mxu0 0.0
    %1324 = vmatprep.subr.mxu0 0.0
    %1325 = vmatpush1.msra.mxu0 0.0
    %1326 = vmatprep.subr.mxu0 0.0
    %1327 = vmatpush1.msra.mxu0 0.0
    %1328 = vmatprep.subr.mxu0 0.0
    %1329 = vmatpush1.msra.mxu0 0.0
    %1330 = vmatprep.subr.mxu0 0.0
    %1331 = vmatpush1.msra.mxu0 0.0
    %1332 = vmatprep.subr.mxu0 0.0
    %1333 = vmatpush1.msra.mxu0 0.0
    %1334 = vmatprep.subr.mxu0 0.0
    %1335 = vmatpush1.msra.mxu0 0.0
    %1336 = vmatprep.subr.mxu0 0.0
    %1337 = vmatpush1.msra.mxu0 0.0
    %1338 = vmatprep.subr.mxu0 0.0
    %1339 = vmatpush1.msra.mxu0 0.0
    %1340 = vmatprep.subr.mxu0 0.0
    %1341 = vmatpush1.msra.mxu0 0.0
    %1342 = vmatprep.subr.mxu0 0.0
    %1343 = vmatpush1.msra.mxu0 0.0
    %1344 = vmatprep.subr.mxu0 0.0
    %1345 = vmatpush1.msra.mxu0 0.0
    %1346 = vmatprep.subr.mxu0 0.0
    %1347 = vmatpush1.msra.mxu0 0.0
    %1348 = vmatprep.mubr.f32.mxu0 0.0
    %1349 = vmatmul.mubr.f32.gmra.mrb[0].mxu0 %v1282
    %v1350 = vpop.f32.mrb[0].mxu0
    %v1351 = vadd.f32 %v233, %v1350
    %v1352 = vpop.f32.mrb[0].mxu0
    %1353 = vdwg.mxu0
    %v1354 = vxor.u32 %v1351, 2147483648
    %v1355 = vmul.f32 %v1354, 1.442695
    %v1356 = vpow.pop %v1355
    %v1357 = vadd.f32 %v1356, 1.0
    %v1358 = vrcp.pop %v1357
    %v1359 = vmul.f32 1.0, %v1358
    %v1360 = vtanh.pop %v1351
    %1361 = vrot.lane.b32.xlu0 %v1360, 64
    %v1362 = vpop.permute.xlu0 %1361
    %v1363 = vmul.f32 %v1359, %v1362
    %v1364 = vmul.f32 %v1359, %v1157
    %1366 = vrot.lane.b32.xlu0 %v1363, 32
    %v1367 = vpop.permute.xlu0 %1366
    %v1369 = vadd.f32 %v1364, %v1367
    %v1370 = vtanh.pop %v1369
    %1371 = vrot.lane.b32.xlu0 %v1370, 64
    %v1372 = vpop.permute.xlu0 %1371
    %v1373 = vmul.f32 %v1359, %v1372
    %v1375 = vrot.slane %v1273, 2
    %v1376 = vsel %vm134, %v1375, 0
    %1378 = vmatprep.subr.mxu0 0.0
    %1379 = vmatpush1.msra.mxu0 %v28
    %1380 = vmatprep.subr.mxu0 0.0
    %1381 = vmatpush1.msra.mxu0 %v29
    %1382 = vmatprep.subr.mxu0 0.0
    %1383 = vmatpush1.msra.mxu0 %v30
    %1384 = vmatprep.subr.mxu0 0.0
    %1385 = vmatpush1.msra.mxu0 %v31
    %1386 = vmatprep.subr.mxu0 0.0
    %1387 = vmatpush1.msra.mxu0 0.0
    %1388 = vmatprep.subr.mxu0 0.0
    %1389 = vmatpush1.msra.mxu0 0.0
    %1390 = vmatprep.subr.mxu0 0.0
    %1391 = vmatpush1.msra.mxu0 0.0
    %1392 = vmatprep.subr.mxu0 0.0
    %1393 = vmatpush1.msra.mxu0 0.0
    %1394 = vmatprep.subr.mxu0 0.0
    %1395 = vmatpush1.msra.mxu0 0.0
    %1396 = vmatprep.subr.mxu0 0.0
    %1397 = vmatpush1.msra.mxu0 0.0
    %1398 = vmatprep.subr.mxu0 0.0
    %1399 = vmatpush1.msra.mxu0 0.0
    %1400 = vmatprep.subr.mxu0 0.0
    %1401 = vmatpush1.msra.mxu0 0.0
    %1402 = vmatprep.subr.mxu0 0.0
    %1403 = vmatpush1.msra.mxu0 0.0
    %1404 = vmatprep.subr.mxu0 0.0
    %1405 = vmatpush1.msra.mxu0 0.0
    %1406 = vmatprep.subr.mxu0 0.0
    %1407 = vmatpush1.msra.mxu0 0.0
    %1408 = vmatprep.subr.mxu0 0.0
    %1409 = vmatpush1.msra.mxu0 0.0
    %1410 = vmatprep.subr.mxu0 0.0
    %1411 = vmatpush1.msra.mxu0 0.0
    %1412 = vmatprep.subr.mxu0 0.0
    %1413 = vmatpush1.msra.mxu0 0.0
    %1414 = vmatprep.subr.mxu0 0.0
    %1415 = vmatpush1.msra.mxu0 0.0
    %1416 = vmatprep.subr.mxu0 0.0
    %1417 = vmatpush1.msra.mxu0 0.0
    %1418 = vmatprep.subr.mxu0 0.0
    %1419 = vmatpush1.msra.mxu0 0.0
    %1420 = vmatprep.subr.mxu0 0.0
    %1421 = vmatpush1.msra.mxu0 0.0
    %1422 = vmatprep.subr.mxu0 0.0
    %1423 = vmatpush1.msra.mxu0 0.0
    %1424 = vmatprep.subr.mxu0 0.0
    %1425 = vmatpush1.msra.mxu0 0.0
    %1426 = vmatprep.subr.mxu0 0.0
    %1427 = vmatpush1.msra.mxu0 0.0
    %1428 = vmatprep.subr.mxu0 0.0
    %1429 = vmatpush1.msra.mxu0 0.0
    %1430 = vmatprep.subr.mxu0 0.0
    %1431 = vmatpush1.msra.mxu0 0.0
    %1432 = vmatprep.subr.mxu0 0.0
    %1433 = vmatpush1.msra.mxu0 0.0
    %1434 = vmatprep.subr.mxu0 0.0
    %1435 = vmatpush1.msra.mxu0 0.0
    %1436 = vmatprep.subr.mxu0 0.0
    %1437 = vmatpush1.msra.mxu0 0.0
    %1438 = vmatprep.subr.mxu0 0.0
    %1439 = vmatpush1.msra.mxu0 0.0
    %1440 = vmatprep.subr.mxu0 0.0
    %1441 = vmatpush1.msra.mxu0 0.0
    %1442 = vmatprep.mubr.f32.mxu0 0.0
    %1443 = vmatmul.mubr.f32.gmra.mrb[0].mxu0 %v1376
    %v1444 = vpop.f32.mrb[0].mxu0
    %v1445 = vadd.f32 0.0, %v1444
    %v1446 = vpop.f32.mrb[0].mxu0
    %1447 = vdwg.mxu0
    %v1449 = vrot.slane %v1445, 4
    %v1451 = vadd.f32 %v131, %v1449
    %v1452 = vxor.u32 %v1451, 2147483648
    %v1453 = vmul.f32 %v1452, 1.442695
    %v1454 = vpow.pop %v1453
    %v1455 = vadd.f32 %v1454, 1.0
    %v1456 = vrcp.pop %v1455
    %v1457 = vmul.f32 1.0, %v1456
    %v1458 = vtanh.pop %v1451
    %v1460 = vrot.slane %v1458, 4
    %1462 = vrot.lane.b32.xlu0 %v1460, 64
    %v1463 = vpop.permute.xlu0 %1462
    %v1465 = vrot.slane %v1463, 4
    %v1467 = vmul.f32 %v1457, %v1465
    %v1469 = vrot.slane %v1263, 6
    %v1471 = vmul.f32 %v1457, %v1469
    %1473 = vrot.lane.b32.xlu0 %v1467, 32
    %v1474 = vpop.permute.xlu0 %1473
    %v1476 = vadd.f32 %v1471, %v1474
    %v1477 = vtanh.pop %v1476
    %v1479 = vrot.slane %v1477, 4
    %1481 = vrot.lane.b32.xlu0 %v1479, 64
    %v1482 = vpop.permute.xlu0 %1481
    %v1484 = vrot.slane %v1482, 4
    %v1486 = vmul.f32 %v1457, %v1484
    %v1488 = vrot.slane %v1373, 4
    %1489 = vrot.lane.b32.xlu0 %v1488, 32
    %v1490 = vpop.permute.xlu0 %1489
    %v1492 = vsel %vm134, %v1486, %v1490
    %v1494 = vrot.slane %v1492, 4
    %v1495 = vsel %vm234, %v1494, 0
    %1497 = vmatprep.subr.mxu0 0.0
    %1498 = vmatpush1.msra.mxu0 %v32
    %1499 = vmatprep.subr.mxu0 0.0
    %1500 = vmatpush1.msra.mxu0 %v33
    %1501 = vmatprep.subr.mxu0 0.0
    %1502 = vmatpush1.msra.mxu0 %v34
    %1503 = vmatprep.subr.mxu0 0.0
    %1504 = vmatpush1.msra.mxu0 %v35
    %1505 = vmatprep.subr.mxu0 0.0
    %1506 = vmatpush1.msra.mxu0 %v36
    %1507 = vmatprep.subr.mxu0 0.0
    %1508 = vmatpush1.msra.mxu0 %v37
    %1509 = vmatprep.subr.mxu0 0.0
    %1510 = vmatpush1.msra.mxu0 %v38
    %1511 = vmatprep.subr.mxu0 0.0
    %1512 = vmatpush1.msra.mxu0 %v39
    %1513 = vmatprep.subr.mxu0 0.0
    %1514 = vmatpush1.msra.mxu0 0.0
    %1515 = vmatprep.subr.mxu0 0.0
    %1516 = vmatpush1.msra.mxu0 0.0
    %1517 = vmatprep.subr.mxu0 0.0
    %1518 = vmatpush1.msra.mxu0 0.0
    %1519 = vmatprep.subr.mxu0 0.0
    %1520 = vmatpush1.msra.mxu0 0.0
    %1521 = vmatprep.subr.mxu0 0.0
    %1522 = vmatpush1.msra.mxu0 0.0
    %1523 = vmatprep.subr.mxu0 0.0
    %1524 = vmatpush1.msra.mxu0 0.0
    %1525 = vmatprep.subr.mxu0 0.0
    %1526 = vmatpush1.msra.mxu0 0.0
    %1527 = vmatprep.subr.mxu0 0.0
    %1528 = vmatpush1.msra.mxu0 0.0
    %1529 = vmatprep.subr.mxu0 0.0
    %1530 = vmatpush1.msra.mxu0 0.0
    %1531 = vmatprep.subr.mxu0 0.0
    %1532 = vmatpush1.msra.mxu0 0.0
    %1533 = vmatprep.subr.mxu0 0.0
    %1534 = vmatpush1.msra.mxu0 0.0
    %1535 = vmatprep.subr.mxu0 0.0
    %1536 = vmatpush1.msra.mxu0 0.0
    %1537 = vmatprep.subr.mxu0 0.0
    %1538 = vmatpush1.msra.mxu0 0.0
    %1539 = vmatprep.subr.mxu0 0.0
    %1540 = vmatpush1.msra.mxu0 0.0
    %1541 = vmatprep.subr.mxu0 0.0
    %1542 = vmatpush1.msra.mxu0 0.0
    %1543 = vmatprep.subr.mxu0 0.0
    %1544 = vmatpush1.msra.mxu0 0.0
    %1545 = vmatprep.subr.mxu0 0.0
    %1546 = vmatpush1.msra.mxu0 0.0
    %1547 = vmatprep.subr.mxu0 0.0
    %1548 = vmatpush1.msra.mxu0 0.0
    %1549 = vmatprep.subr.mxu0 0.0
    %1550 = vmatpush1.msra.mxu0 0.0
    %1551 = vmatprep.subr.mxu0 0.0
    %1552 = vmatpush1.msra.mxu0 0.0
    %1553 = vmatprep.subr.mxu0 0.0
    %1554 = vmatpush1.msra.mxu0 0.0
    %1555 = vmatprep.subr.mxu0 0.0
    %1556 = vmatpush1.msra.mxu0 0.0
    %1557 = vmatprep.subr.mxu0 0.0
    %1558 = vmatpush1.msra.mxu0 0.0
    %1559 = vmatprep.subr.mxu0 0.0
    %1560 = vmatpush1.msra.mxu0 0.0
    %1561 = vmatprep.mubr.f32.mxu0 0.0
    %1562 = vmatmul.mubr.f32.gmra.mrb[0].mxu0 %v1495
    %v1563 = vpop.f32.mrb[0].mxu0
    %v1564 = vadd.f32 %v233, %v1563
    %v1565 = vpop.f32.mrb[0].mxu0
    %1566 = vdwg.mxu0
    %v1567 = vxor.u32 %v1564, 2147483648
    %v1568 = vmul.f32 %v1567, 1.442695
    %v1569 = vpow.pop %v1568
    %v1570 = vadd.f32 %v1569, 1.0
    %v1571 = vrcp.pop %v1570
    %v1572 = vmul.f32 1.0, %v1571
    %v1573 = vtanh.pop %v1564
    %1574 = vrot.lane.b32.xlu0 %v1573, 64
    %v1575 = vpop.permute.xlu0 %1574
    %v1576 = vmul.f32 %v1572, %v1575
    %v1577 = vmul.f32 %v1572, %v1369
    %1579 = vrot.lane.b32.xlu0 %v1576, 32
    %v1580 = vpop.permute.xlu0 %1579
    %v1582 = vadd.f32 %v1577, %v1580
    %v1583 = vtanh.pop %v1582
    %1584 = vrot.lane.b32.xlu0 %v1583, 64
    %v1585 = vpop.permute.xlu0 %1584
    %v1586 = vmul.f32 %v1572, %v1585
    %v1588 = vrot.slane %v1486, 4
    %v1589 = vsel %vm134, %v1588, 0
    %1591 = vmatprep.subr.mxu0 0.0
    %1592 = vmatpush1.msra.mxu0 %v28
    %1593 = vmatprep.subr.mxu0 0.0
    %1594 = vmatpush1.msra.mxu0 %v29
    %1595 = vmatprep.subr.mxu0 0.0
    %1596 = vmatpush1.msra.mxu0 %v30
    %1597 = vmatprep.subr.mxu0 0.0
    %1598 = vmatpush1.msra.mxu0 %v31
    %1599 = vmatprep.subr.mxu0 0.0
    %1600 = vmatpush1.msra.mxu0 0.0
    %1601 = vmatprep.subr.mxu0 0.0
    %1602 = vmatpush1.msra.mxu0 0.0
    %1603 = vmatprep.subr.mxu0 0.0
    %1604 = vmatpush1.msra.mxu0 0.0
    %1605 = vmatprep.subr.mxu0 0.0
    %1606 = vmatpush1.msra.mxu0 0.0
    %1607 = vmatprep.subr.mxu0 0.0
    %1608 = vmatpush1.msra.mxu0 0.0
    %1609 = vmatprep.subr.mxu0 0.0
    %1610 = vmatpush1.msra.mxu0 0.0
    %1611 = vmatprep.subr.mxu0 0.0
    %1612 = vmatpush1.msra.mxu0 0.0
    %1613 = vmatprep.subr.mxu0 0.0
    %1614 = vmatpush1.msra.mxu0 0.0
    %1615 = vmatprep.subr.mxu0 0.0
    %1616 = vmatpush1.msra.mxu0 0.0
    %1617 = vmatprep.subr.mxu0 0.0
    %1618 = vmatpush1.msra.mxu0 0.0
    %1619 = vmatprep.subr.mxu0 0.0
    %1620 = vmatpush1.msra.mxu0 0.0
    %1621 = vmatprep.subr.mxu0 0.0
    %1622 = vmatpush1.msra.mxu0 0.0
    %1623 = vmatprep.subr.mxu0 0.0
    %1624 = vmatpush1.msra.mxu0 0.0
    %1625 = vmatprep.subr.mxu0 0.0
    %1626 = vmatpush1.msra.mxu0 0.0
    %1627 = vmatprep.subr.mxu0 0.0
    %1628 = vmatpush1.msra.mxu0 0.0
    %1629 = vmatprep.subr.mxu0 0.0
    %1630 = vmatpush1.msra.mxu0 0.0
    %1631 = vmatprep.subr.mxu0 0.0
    %1632 = vmatpush1.msra.mxu0 0.0
    %1633 = vmatprep.subr.mxu0 0.0
    %1634 = vmatpush1.msra.mxu0 0.0
    %1635 = vmatprep.subr.mxu0 0.0
    %1636 = vmatpush1.msra.mxu0 0.0
    %1637 = vmatprep.subr.mxu0 0.0
    %1638 = vmatpush1.msra.mxu0 0.0
    %1639 = vmatprep.subr.mxu0 0.0
    %1640 = vmatpush1.msra.mxu0 0.0
    %1641 = vmatprep.subr.mxu0 0.0
    %1642 = vmatpush1.msra.mxu0 0.0
    %1643 = vmatprep.subr.mxu0 0.0
    %1644 = vmatpush1.msra.mxu0 0.0
    %1645 = vmatprep.subr.mxu0 0.0
    %1646 = vmatpush1.msra.mxu0 0.0
    %1647 = vmatprep.subr.mxu0 0.0
    %1648 = vmatpush1.msra.mxu0 0.0
    %1649 = vmatprep.subr.mxu0 0.0
    %1650 = vmatpush1.msra.mxu0 0.0
    %1651 = vmatprep.subr.mxu0 0.0
    %1652 = vmatpush1.msra.mxu0 0.0
    %1653 = vmatprep.subr.mxu0 0.0
    %1654 = vmatpush1.msra.mxu0 0.0
    %1655 = vmatprep.mubr.f32.mxu0 0.0
    %1656 = vmatmul.mubr.f32.gmra.mrb[0].mxu0 %v1589
    %v1657 = vpop.f32.mrb[0].mxu0
    %v1658 = vadd.f32 0.0, %v1657
    %v1659 = vpop.f32.mrb[0].mxu0
    %1660 = vdwg.mxu0
    %v1662 = vrot.slane %v1658, 2
    %v1664 = vadd.f32 %v131, %v1662
    %v1665 = vxor.u32 %v1664, 2147483648
    %v1666 = vmul.f32 %v1665, 1.442695
    %v1667 = vpow.pop %v1666
    %v1668 = vadd.f32 %v1667, 1.0
    %v1669 = vrcp.pop %v1668
    %v1670 = vmul.f32 1.0, %v1669
    %v1671 = vtanh.pop %v1664
    %v1673 = vrot.slane %v1671, 6
    %1675 = vrot.lane.b32.xlu0 %v1673, 64
    %v1676 = vpop.permute.xlu0 %1675
    %v1678 = vrot.slane %v1676, 2
    %v1680 = vmul.f32 %v1670, %v1678
    %v1682 = vrot.slane %v1476, 6
    %v1684 = vmul.f32 %v1670, %v1682
    %1686 = vrot.lane.b32.xlu0 %v1680, 32
    %v1687 = vpop.permute.xlu0 %1686
    %v1689 = vadd.f32 %v1684, %v1687
    %v1690 = vtanh.pop %v1689
    %v1692 = vrot.slane %v1690, 6
    %1694 = vrot.lane.b32.xlu0 %v1692, 64
    %v1695 = vpop.permute.xlu0 %1694
    %v1697 = vrot.slane %v1695, 2
    %v1699 = vmul.f32 %v1670, %v1697
    %v1701 = vrot.slane %v1586, 2
    %1702 = vrot.lane.b32.xlu0 %v1701, 32
    %v1703 = vpop.permute.xlu0 %1702
    %v1705 = vsel %vm134, %v1699, %v1703
    %v1707 = vrot.slane %v1705, 6
    %v1708 = vsel %vm234, %v1707, 0
    %1710 = vmatprep.subr.mxu0 0.0
    %1711 = vmatpush1.msra.mxu0 %v32
    %1712 = vmatprep.subr.mxu0 0.0
    %1713 = vmatpush1.msra.mxu0 %v33
    %1714 = vmatprep.subr.mxu0 0.0
    %1715 = vmatpush1.msra.mxu0 %v34
    %1716 = vmatprep.subr.mxu0 0.0
    %1717 = vmatpush1.msra.mxu0 %v35
    %1718 = vmatprep.subr.mxu0 0.0
    %1719 = vmatpush1.msra.mxu0 %v36
    %1720 = vmatprep.subr.mxu0 0.0
    %1721 = vmatpush1.msra.mxu0 %v37
    %1722 = vmatprep.subr.mxu0 0.0
    %1723 = vmatpush1.msra.mxu0 %v38
    %1724 = vmatprep.subr.mxu0 0.0
    %1725 = vmatpush1.msra.mxu0 %v39
    %1726 = vmatprep.subr.mxu0 0.0
    %1727 = vmatpush1.msra.mxu0 0.0
    %1728 = vmatprep.subr.mxu0 0.0
    %1729 = vmatpush1.msra.mxu0 0.0
    %1730 = vmatprep.subr.mxu0 0.0
    %1731 = vmatpush1.msra.mxu0 0.0
    %1732 = vmatprep.subr.mxu0 0.0
    %1733 = vmatpush1.msra.mxu0 0.0
    %1734 = vmatprep.subr.mxu0 0.0
    %1735 = vmatpush1.msra.mxu0 0.0
    %1736 = vmatprep.subr.mxu0 0.0
    %1737 = vmatpush1.msra.mxu0 0.0
    %1738 = vmatprep.subr.mxu0 0.0
    %1739 = vmatpush1.msra.mxu0 0.0
    %1740 = vmatprep.subr.mxu0 0.0
    %1741 = vmatpush1.msra.mxu0 0.0
    %1742 = vmatprep.subr.mxu0 0.0
    %1743 = vmatpush1.msra.mxu0 0.0
    %1744 = vmatprep.subr.mxu0 0.0
    %1745 = vmatpush1.msra.mxu0 0.0
    %1746 = vmatprep.subr.mxu0 0.0
    %1747 = vmatpush1.msra.mxu0 0.0
    %1748 = vmatprep.subr.mxu0 0.0
    %1749 = vmatpush1.msra.mxu0 0.0
    %1750 = vmatprep.subr.mxu0 0.0
    %1751 = vmatpush1.msra.mxu0 0.0
    %1752 = vmatprep.subr.mxu0 0.0
    %1753 = vmatpush1.msra.mxu0 0.0
    %1754 = vmatprep.subr.mxu0 0.0
    %1755 = vmatpush1.msra.mxu0 0.0
    %1756 = vmatprep.subr.mxu0 0.0
    %1757 = vmatpush1.msra.mxu0 0.0
    %1758 = vmatprep.subr.mxu0 0.0
    %1759 = vmatpush1.msra.mxu0 0.0
    %1760 = vmatprep.subr.mxu0 0.0
    %1761 = vmatpush1.msra.mxu0 0.0
    %1762 = vmatprep.subr.mxu0 0.0
    %1763 = vmatpush1.msra.mxu0 0.0
    %1764 = vmatprep.subr.mxu0 0.0
    %1765 = vmatpush1.msra.mxu0 0.0
    %1766 = vmatprep.subr.mxu0 0.0
    %1767 = vmatpush1.msra.mxu0 0.0
    %1768 = vmatprep.subr.mxu0 0.0
    %1769 = vmatpush1.msra.mxu0 0.0
    %1770 = vmatprep.subr.mxu0 0.0
    %1771 = vmatpush1.msra.mxu0 0.0
    %1772 = vmatprep.subr.mxu0 0.0
    %1773 = vmatpush1.msra.mxu0 0.0
    %1774 = vmatprep.mubr.f32.mxu0 0.0
    %1775 = vmatmul.mubr.f32.gmra.mrb[0].mxu0 %v1708
    %v1776 = vpop.f32.mrb[0].mxu0
    %v1777 = vadd.f32 %v233, %v1776
    %v1778 = vpop.f32.mrb[0].mxu0
    %1779 = vdwg.mxu0
    %v1780 = vxor.u32 %v1777, 2147483648
    %v1781 = vmul.f32 %v1780, 1.442695
    %v1782 = vpow.pop %v1781
    %v1783 = vadd.f32 %v1782, 1.0
    %v1784 = vrcp.pop %v1783
    %v1785 = vmul.f32 1.0, %v1784
    %v1786 = vtanh.pop %v1777
    %1787 = vrot.lane.b32.xlu0 %v1786, 64
    %v1788 = vpop.permute.xlu0 %1787
    %v1789 = vmul.f32 %v1785, %v1788
    %v1790 = vmul.f32 %v1785, %v1582
    %1792 = vrot.lane.b32.xlu0 %v1789, 32
    %v1793 = vpop.permute.xlu0 %1792
    %v1795 = vadd.f32 %v1790, %v1793
    %v1796 = vtanh.pop %v1795
    %1797 = vrot.lane.b32.xlu0 %v1796, 64
    %v1798 = vpop.permute.xlu0 %1797
    %v1799 = vmul.f32 %v1785, %v1798
    %v1800 = vlaneseq
    %v1801 = vshrl.u32 %v1800, 7
    %v1802 = vsub.s32 0, %v1801
    %v1803 = vrot.slane %v45, %v1802
    %v1805 = vsel %vm134, %v1799, 0
    %1807 = vmatprep.subr.mxu0 0.0
    %1808 = vmatpush1.msra.mxu0 %v41
    %1809 = vmatprep.subr.mxu0 0.0
    %1810 = vmatpush1.msra.mxu0 %v42
    %1811 = vmatprep.subr.mxu0 0.0
    %1812 = vmatpush1.msra.mxu0 %v43
    %1813 = vmatprep.subr.mxu0 0.0
    %1814 = vmatpush1.msra.mxu0 %v44
    %1815 = vmatprep.subr.mxu0 0.0
    %1816 = vmatpush1.msra.mxu0 0.0
    %1817 = vmatprep.subr.mxu0 0.0
    %1818 = vmatpush1.msra.mxu0 0.0
    %1819 = vmatprep.subr.mxu0 0.0
    %1820 = vmatpush1.msra.mxu0 0.0
    %1821 = vmatprep.subr.mxu0 0.0
    %1822 = vmatpush1.msra.mxu0 0.0
    %1823 = vmatprep.subr.mxu0 0.0
    %1824 = vmatpush1.msra.mxu0 0.0
    %1825 = vmatprep.subr.mxu0 0.0
    %1826 = vmatpush1.msra.mxu0 0.0
    %1827 = vmatprep.subr.mxu0 0.0
    %1828 = vmatpush1.msra.mxu0 0.0
    %1829 = vmatprep.subr.mxu0 0.0
    %1830 = vmatpush1.msra.mxu0 0.0
    %1831 = vmatprep.subr.mxu0 0.0
    %1832 = vmatpush1.msra.mxu0 0.0
    %1833 = vmatprep.subr.mxu0 0.0
    %1834 = vmatpush1.msra.mxu0 0.0
    %1835 = vmatprep.subr.mxu0 0.0
    %1836 = vmatpush1.msra.mxu0 0.0
    %1837 = vmatprep.subr.mxu0 0.0
    %1838 = vmatpush1.msra.mxu0 0.0
    %1839 = vmatprep.subr.mxu0 0.0
    %1840 = vmatpush1.msra.mxu0 0.0
    %1841 = vmatprep.subr.mxu0 0.0
    %1842 = vmatpush1.msra.mxu0 0.0
    %1843 = vmatprep.subr.mxu0 0.0
    %1844 = vmatpush1.msra.mxu0 0.0
    %1845 = vmatprep.subr.mxu0 0.0
    %1846 = vmatpush1.msra.mxu0 0.0
    %1847 = vmatprep.subr.mxu0 0.0
    %1848 = vmatpush1.msra.mxu0 0.0
    %1849 = vmatprep.subr.mxu0 0.0
    %1850 = vmatpush1.msra.mxu0 0.0
    %1851 = vmatprep.subr.mxu0 0.0
    %1852 = vmatpush1.msra.mxu0 0.0
    %1853 = vmatprep.subr.mxu0 0.0
    %1854 = vmatpush1.msra.mxu0 0.0
    %1855 = vmatprep.subr.mxu0 0.0
    %1856 = vmatpush1.msra.mxu0 0.0
    %1857 = vmatprep.subr.mxu0 0.0
    %1858 = vmatpush1.msra.mxu0 0.0
    %1859 = vmatprep.subr.mxu0 0.0
    %1860 = vmatpush1.msra.mxu0 0.0
    %1861 = vmatprep.subr.mxu0 0.0
    %1862 = vmatpush1.msra.mxu0 0.0
    %1863 = vmatprep.subr.mxu0 0.0
    %1864 = vmatpush1.msra.mxu0 0.0
    %1865 = vmatprep.subr.mxu0 0.0
    %1866 = vmatpush1.msra.mxu0 0.0
    %1867 = vmatprep.subr.mxu0 0.0
    %1868 = vmatpush1.msra.mxu0 0.0
    %1869 = vmatprep.subr.mxu0 0.0
    %1870 = vmatpush1.msra.mxu0 0.0
    %1871 = vmatprep.mubr.f32.mxu0 0.0
    %1872 = vmatmul.mubr.f32.gmra.mrb[0].mxu0 %v1805
    %v1873 = vpop.f32.mrb[0].mxu0
    %v1874 = vadd.f32 %v1803, %v1873
    %v1875 = vpop.f32.mrb[0].mxu0
    %1876 = vdwg.mxu0
    %1877 = vst [vmem:[%s2] sm:$0x3] %v1874
    // Predicated region
    $region14: #{siamese_lstm_forward.1} parent=1 // pred_check
      _
    $region15: #{siamese_lstm_forward.1} parent=1 // pred_check_branch
      %1879 = sbr.rel (0) target = $region17
    $region16: #{siamese_lstm_forward.1} parent=1 // pred_region
      _
    $region17: #{siamese_lstm_forward.1} parent=1 // pred_fallthru
      _
    // Predicated region
    $region18: #{siamese_lstm_forward.1} parent=1 // pred_check
      _
    $region19: #{siamese_lstm_forward.1} parent=1 // pred_check_branch
      %1881 = sbr.rel (0) target = $region21
    $region20: #{siamese_lstm_forward.1} parent=1 // pred_region
      _
    $region21: #{siamese_lstm_forward.1} parent=1 // pred_fallthru
      _
    %1882 = vsyncpa [#allocation3], 1

</llo_original>
